<compile_context>
chip_gen: v7x
topology: tpu7x:2x2x1
jax: 0.10.0
libtpu: 0.0.40
codegen_flags: <defaults>
</compile_context>

<pallas_src>
import jax
import jax.numpy as jnp
from jax.experimental import pallas as pl
from jax.experimental.pallas import tpu as pltpu


# ---- model hyper-parameters (from the PyTorch module) ----------------------
GENMAP_ROW = 16            # config.params['genmap_rowNum']  (small test value)
GENMAP_COL = 16            # config.params['genmap_colNum']  (small test value)
IN_FEATURES = GENMAP_ROW * GENMAP_COL          # 256
FIRST_LAYER = 1024
SECOND_LAYER = FIRST_LAYER // 2                # 512
THIRD_LAYER = SECOND_LAYER // 2                # 256
OUT_FEATURES = 1
LEAKY_SLOPE = 0.1

MAX_BATCH_TILE = 256       # 128-256 rows keeps the MXU M dimension busy


def _leaky_relu(x, slope):
    return jnp.where(x > 0, x, slope * x)


def _round_up(x, m):
    return ((x + m - 1) // m) * m


def _choose_batch_tile(batch):
    """Per-shape batch tile: small batches pad only to 8, large ones use 256."""
    b8 = _round_up(batch, 8)
    return b8 if b8 <= MAX_BATCH_TILE else MAX_BATCH_TILE


def mlp_kernel(x_ref,
               w1_ref, b1_ref,
               w2_ref, b2_ref,
               w3_ref, b3_ref,
               w4_ref, b4_ref,
               o_ref):
    """Fused 4-layer MLP for one batch tile.

    x_ref      : (BT, 256) f32
    w1/w2/w3   : bf16 weights, (in, out)
    b1/b2/b3/b4: f32 biases, (1, out)
    w4_ref     : (1, 256) f32 (final layer weight presented as a lane row)
    o_ref      : (BT, 1) f32
    """
    x = x_ref[...].astype(jnp.bfloat16)

    h = jnp.dot(x, w1_ref[...], preferred_element_type=jnp.float32) + b1_ref[...]
    h = _leaky_relu(h, LEAKY_SLOPE)
    # Dropout(0.3) -> identity (eval mode)

    h = jnp.dot(h.astype(jnp.bfloat16), w2_ref[...],
                preferred_element_type=jnp.float32) + b2_ref[...]
    h = _leaky_relu(h, LEAKY_SLOPE)
    # Dropout(0.3) -> identity (eval mode)

    h = jnp.dot(h.astype(jnp.bfloat16), w3_ref[...],
                preferred_element_type=jnp.float32) + b3_ref[...]
    h = _leaky_relu(h, LEAKY_SLOPE)
    # Dropout(0.3) -> identity (eval mode)

    # Final Linear(256 -> 1): VPU multiply + cross-lane reduce instead of an
    # almost-empty MXU matmul with a masked 1-lane result.
    logits = jnp.sum(h * w4_ref[...], axis=-1, keepdims=True) + b4_ref[...]

    # Sigmoid: exp on the EUP; approximate reciprocal also rides the EUP slot.
    o_ref[...] = (pl.reciprocal(1.0 + jnp.exp(-logits), approx=True)
                  ).astype(o_ref.dtype)


@jax.jit
def discriminator_mlp_forward(x, params):
    """x: (B, IN_FEATURES) float32 -> (B, 1) float32 in (0, 1)."""
    (w1, b1, w2, b2, w3, b3, w4, b4) = params
    b = x.shape[0]

    batch_tile = _choose_batch_tile(b)
    b_pad = _round_up(b, batch_tile)
    if b_pad != b:
        x = jnp.pad(x, ((0, b_pad - b), (0, 0)))
    num_tiles = b_pad // batch_tile

    # bf16 weights: halves the dominant HBM weight traffic and is the MXU's
    # native input width. Accumulation stays f32 inside the kernel.
    w1b = w1.astype(jnp.bfloat16)
    w2b = w2.astype(jnp.bfloat16)
    w3b = w3.astype(jnp.bfloat16)
    # Final-layer weight as a lane-dense (1, 256) f32 row for the VPU reduce.
    w4r = w4.reshape(1, THIRD_LAYER).astype(jnp.float32)

    def resident(shape):
        nd = len(shape)
        return pl.BlockSpec(shape, lambda i, _nd=nd: (0,) * _nd)

    out = pl.pallas_call(
        mlp_kernel,
        out_shape=jax.ShapeDtypeStruct((b_pad, OUT_FEATURES), jnp.float32),
        grid_spec=pltpu.PrefetchScalarGridSpec(
            num_scalar_prefetch=0,
            grid=(num_tiles,),
            in_specs=[
                pl.BlockSpec((batch_tile, IN_FEATURES), lambda i: (i, 0)),
                resident(w1b.shape), resident(b1.shape),
                resident(w2b.shape), resident(b2.shape),
                resident(w3b.shape), resident(b3.shape),
                resident(w4r.shape), resident(b4.shape),
            ],
            out_specs=pl.BlockSpec((batch_tile, OUT_FEATURES), lambda i: (i, 0)),
        ),
        compiler_params=pltpu.CompilerParams(
            dimension_semantics=("parallel",),
        ),
    )(x, w1b, b1, w2b, b2, w3b, b3, w4r, b4)

    return out[:b]


def init_params(key):
    """PyTorch-style uniform(+-1/sqrt(fan_in)) init.

    Weights stored transposed vs torch.nn.Linear: (in_features, out_features);
    biases as (1, out_features). All f32 (bf16 cast happens in the wrapper).
    """
    dims = [IN_FEATURES, FIRST_LAYER, SECOND_LAYER, THIRD_LAYER, OUT_FEATURES]
    params = []
    for fan_in, fan_out in zip(dims[:-1], dims[1:]):
        key, kw, kb = jax.random.split(key, 3)
        bound = 1.0 / (fan_in ** 0.5)
        w = jax.random.uniform(kw, (fan_in, fan_out), jnp.float32, -bound, bound)
        b = jax.random.uniform(kb, (1, fan_out), jnp.float32, -bound, bound)
        params.extend([w, b])
    return tuple(params)


def reference_forward(x, params):
    """Plain-JAX reference using the same bf16-weight recipe as the kernel."""
    (w1, b1, w2, b2, w3, b3, w4, b4) = params
    h = x.astype(jnp.bfloat16)
    h = _leaky_relu(jnp.dot(h, w1.astype(jnp.bfloat16),
                            preferred_element_type=jnp.float32) + b1, LEAKY_SLOPE)
    h = _leaky_relu(jnp.dot(h.astype(jnp.bfloat16), w2.astype(jnp.bfloat16),
                            preferred_element_type=jnp.float32) + b2, LEAKY_SLOPE)
    h = _leaky_relu(jnp.dot(h.astype(jnp.bfloat16), w3.astype(jnp.bfloat16),
                            preferred_element_type=jnp.float32) + b3, LEAKY_SLOPE)
    return jax.nn.sigmoid(h @ w4 + b4)


def reference_forward_f32(x, params):
    """Full-f32 eval-mode reference (matches the PyTorch module numerics)."""
    (w1, b1, w2, b2, w3, b3, w4, b4) = params
    h = _leaky_relu(x @ w1 + b1, LEAKY_SLOPE)
    h = _leaky_relu(h @ w2 + b2, LEAKY_SLOPE)
    h = _leaky_relu(h @ w3 + b3, LEAKY_SLOPE)
    return jax.nn.sigmoid(h @ w4 + b4)


if __name__ == "__main__":
    key = jax.random.PRNGKey(0)
    k_params, k_x, k_x2 = jax.random.split(key, 3)

    params = init_params(k_params)

    # Small serving batch: flattened (batch, 16, 16) genomap.
    batch = 2
    x = jax.random.normal(k_x, (batch, IN_FEATURES), dtype=jnp.float32)

    out = jax.block_until_ready(discriminator_mlp_forward(x, params))
    assert out.shape == (batch, OUT_FEATURES), out.shape
    ref = reference_forward(x, params)
    assert jnp.allclose(out, ref, atol=2e-3, rtol=2e-3), (out, ref)
    ref32 = reference_forward_f32(x, params)
    assert jnp.allclose(out, ref32, atol=1e-1), (out, ref32)

    # Larger batch: exercises the 256-row tile path, batch padding and a
    # multi-step ("parallel") grid.
    batch2 = 300
    x2 = jax.random.normal(k_x2, (batch2, IN_FEATURES), dtype=jnp.float32)
    out2 = jax.block_until_ready(discriminator_mlp_forward(x2, params))
    assert out2.shape == (batch2, OUT_FEATURES), out2.shape
    ref2 = reference_forward(x2, params)
    assert jnp.allclose(out2, ref2, atol=2e-3, rtol=2e-3), (out2, ref2)

    print("KERNEL_OK")
</pallas_src>

<mosaic_0001>
module attributes {stable_mosaic.version = 11 : i64} {
  func.func @mlp_kernel(%arg0: i32, %arg1: memref<8x256xf32, #tpu.memory_space<vmem>>, %arg2: memref<256x1024xbf16, #tpu.memory_space<vmem>>, %arg3: memref<1x1024xf32, #tpu.memory_space<vmem>>, %arg4: memref<1024x512xbf16, #tpu.memory_space<vmem>>, %arg5: memref<1x512xf32, #tpu.memory_space<vmem>>, %arg6: memref<512x256xbf16, #tpu.memory_space<vmem>>, %arg7: memref<1x256xf32, #tpu.memory_space<vmem>>, %arg8: memref<1x256xf32, #tpu.memory_space<vmem>>, %arg9: memref<1x1xf32, #tpu.memory_space<vmem>>, %arg10: memref<8x1xf32, #tpu.memory_space<vmem>>) attributes {dimension_semantics = [#tpu.dimension_semantics<parallel>], iteration_bounds = array<i64: 1>, scalar_prefetch = 0 : i64, scratch_operands = 0 : i64, tpu.core_type = #tpu.core_type<tc>, window_params = [{transform_indices = @transform_0, window_bounds = array<i64: 8, 256>}, {pipeline_mode = #tpu.pipeline_mode<synchronous>, transform_indices = @transform_1, window_bounds = array<i64: 256, 1024>}, {pipeline_mode = #tpu.pipeline_mode<synchronous>, transform_indices = @transform_2, window_bounds = array<i64: 1, 1024>}, {pipeline_mode = #tpu.pipeline_mode<synchronous>, transform_indices = @transform_3, window_bounds = array<i64: 1024, 512>}, {pipeline_mode = #tpu.pipeline_mode<synchronous>, transform_indices = @transform_4, window_bounds = array<i64: 1, 512>}, {pipeline_mode = #tpu.pipeline_mode<synchronous>, transform_indices = @transform_5, window_bounds = array<i64: 512, 256>}, {pipeline_mode = #tpu.pipeline_mode<synchronous>, transform_indices = @transform_6, window_bounds = array<i64: 1, 256>}, {pipeline_mode = #tpu.pipeline_mode<synchronous>, transform_indices = @transform_7, window_bounds = array<i64: 1, 256>}, {pipeline_mode = #tpu.pipeline_mode<synchronous>, transform_indices = @transform_8, window_bounds = array<i64: 1, 1>}, {transform_indices = @transform_9, window_bounds = array<i64: 8, 1>}]} {
    %c0 = arith.constant 0 : index
    %c0_0 = arith.constant 0 : index
    %0 = vector.load %arg1[%c0, %c0_0] : memref<8x256xf32, #tpu.memory_space<vmem>>, vector<8x256xf32>
    %1 = arith.truncf %0 : vector<8x256xf32> to vector<8x256xbf16>
    %c0_1 = arith.constant 0 : index
    %c0_2 = arith.constant 0 : index
    %2 = vector.load %arg2[%c0_1, %c0_2] : memref<256x1024xbf16, #tpu.memory_space<vmem>>, vector<256x1024xbf16>
    %cst = arith.constant dense<0.000000e+00> : vector<8x1024xf32>
    %3 = tpu.matmul %1, %2, %cst {dimension_numbers = #tpu.dot_dimension_numbers<[1], [0], [0], [1], [0, 0, 1, 1], [], []>} : vector<8x256xbf16>, vector<256x1024xbf16>, vector<8x1024xf32> -> vector<8x1024xf32>
    %c0_3 = arith.constant 0 : index
    %c0_4 = arith.constant 0 : index
    %4 = vector.load %arg3[%c0_3, %c0_4] : memref<1x1024xf32, #tpu.memory_space<vmem>>, vector<1x1024xf32>
    %5 = vector.broadcast %4 : vector<1x1024xf32> to vector<8x1024xf32>
    %6 = arith.addf %3, %5 : vector<8x1024xf32>
    %cst_5 = arith.constant 0.000000e+00 : f32
    %7 = vector.broadcast %cst_5 : f32 to vector<8x1024xf32>
    %8 = arith.cmpf ogt, %6, %7 : vector<8x1024xf32>
    %cst_6 = arith.constant 1.000000e-01 : f32
    %9 = vector.broadcast %cst_6 : f32 to vector<8x1024xf32>
    %10 = arith.mulf %9, %6 : vector<8x1024xf32>
    %11 = arith.select %8, %6, %10 : vector<8x1024xi1>, vector<8x1024xf32>
    %12 = arith.truncf %11 : vector<8x1024xf32> to vector<8x1024xbf16>
    %c0_7 = arith.constant 0 : index
    %c0_8 = arith.constant 0 : index
    %13 = vector.load %arg4[%c0_7, %c0_8] : memref<1024x512xbf16, #tpu.memory_space<vmem>>, vector<1024x512xbf16>
    %cst_9 = arith.constant dense<0.000000e+00> : vector<8x512xf32>
    %14 = tpu.matmul %12, %13, %cst_9 {dimension_numbers = #tpu.dot_dimension_numbers<[1], [0], [0], [1], [0, 0, 1, 1], [], []>} : vector<8x1024xbf16>, vector<1024x512xbf16>, vector<8x512xf32> -> vector<8x512xf32>
    %c0_10 = arith.constant 0 : index
    %c0_11 = arith.constant 0 : index
    %15 = vector.load %arg5[%c0_10, %c0_11] : memref<1x512xf32, #tpu.memory_space<vmem>>, vector<1x512xf32>
    %16 = vector.broadcast %15 : vector<1x512xf32> to vector<8x512xf32>
    %17 = arith.addf %14, %16 : vector<8x512xf32>
    %cst_12 = arith.constant 0.000000e+00 : f32
    %18 = vector.broadcast %cst_12 : f32 to vector<8x512xf32>
    %19 = arith.cmpf ogt, %17, %18 : vector<8x512xf32>
    %cst_13 = arith.constant 1.000000e-01 : f32
    %20 = vector.broadcast %cst_13 : f32 to vector<8x512xf32>
    %21 = arith.mulf %20, %17 : vector<8x512xf32>
    %22 = arith.select %19, %17, %21 : vector<8x512xi1>, vector<8x512xf32>
    %23 = arith.truncf %22 : vector<8x512xf32> to vector<8x512xbf16>
    %c0_14 = arith.constant 0 : index
    %c0_15 = arith.constant 0 : index
    %24 = vector.load %arg6[%c0_14, %c0_15] : memref<512x256xbf16, #tpu.memory_space<vmem>>, vector<512x256xbf16>
    %cst_16 = arith.constant dense<0.000000e+00> : vector<8x256xf32>
    %25 = tpu.matmul %23, %24, %cst_16 {dimension_numbers = #tpu.dot_dimension_numbers<[1], [0], [0], [1], [0, 0, 1, 1], [], []>} : vector<8x512xbf16>, vector<512x256xbf16>, vector<8x256xf32> -> vector<8x256xf32>
    %c0_17 = arith.constant 0 : index
    %c0_18 = arith.constant 0 : index
    %26 = vector.load %arg7[%c0_17, %c0_18] : memref<1x256xf32, #tpu.memory_space<vmem>>, vector<1x256xf32>
    %27 = vector.broadcast %26 : vector<1x256xf32> to vector<8x256xf32>
    %28 = arith.addf %25, %27 : vector<8x256xf32>
    %cst_19 = arith.constant 0.000000e+00 : f32
    %29 = vector.broadcast %cst_19 : f32 to vector<8x256xf32>
    %30 = arith.cmpf ogt, %28, %29 : vector<8x256xf32>
    %cst_20 = arith.constant 1.000000e-01 : f32
    %31 = vector.broadcast %cst_20 : f32 to vector<8x256xf32>
    %32 = arith.mulf %31, %28 : vector<8x256xf32>
    %33 = arith.select %30, %28, %32 : vector<8x256xi1>, vector<8x256xf32>
    %c0_21 = arith.constant 0 : index
    %c0_22 = arith.constant 0 : index
    %34 = vector.load %arg8[%c0_21, %c0_22] : memref<1x256xf32, #tpu.memory_space<vmem>>, vector<1x256xf32>
    %35 = vector.broadcast %34 : vector<1x256xf32> to vector<8x256xf32>
    %36 = arith.mulf %33, %35 : vector<8x256xf32>
    %cst_23 = arith.constant dense<0.000000e+00> : vector<8xf32>
    %37 = vector.multi_reduction <add>, %36, %cst_23 [1] : vector<8x256xf32> to vector<8xf32>
    %38 = vector.shape_cast %37 : vector<8xf32> to vector<8x1xf32>
    %c0_24 = arith.constant 0 : index
    %c0_25 = arith.constant 0 : index
    %39 = vector.load %arg9[%c0_24, %c0_25] : memref<1x1xf32, #tpu.memory_space<vmem>>, vector<1x1xf32>
    %40 = vector.broadcast %39 : vector<1x1xf32> to vector<8x1xf32>
    %41 = arith.addf %38, %40 : vector<8x1xf32>
    %cst_26 = arith.constant 0.000000e+00 : f32
    %42 = vector.broadcast %cst_26 : f32 to vector<8x1xf32>
    %43 = arith.subf %42, %41 : vector<8x1xf32>
    %44 = math.exp %43 : vector<8x1xf32>
    %cst_27 = arith.constant 1.000000e+00 : f32
    %45 = vector.broadcast %cst_27 : f32 to vector<8x1xf32>
    %46 = arith.addf %45, %44 : vector<8x1xf32>
    %47 = tpu.reciprocal %46 {approx = true} : vector<8x1xf32> -> vector<8x1xf32>
    %c0_28 = arith.constant 0 : index
    %c0_29 = arith.constant 0 : index
    %48 = vector.load %arg10[%c0_28, %c0_29] : memref<8x1xf32, #tpu.memory_space<vmem>>, vector<8x1xf32>
    tpu.vector_store %arg10[%c0_28, %c0_29], %47 {strides = array<i32>} : memref<8x1xf32, #tpu.memory_space<vmem>>, vector<8x1xf32>,
    return
  }
  func.func @transform_0(%arg0: i32) -> (i32, i32) {
    %c0_i32 = arith.constant 0 : i32
    %c0_i32_0 = arith.constant 0 : i32
    return %arg0, %c0_i32 : i32, i32
  }
  func.func @transform_1(%arg0: i32) -> (i32, i32) {
    %c0_i32 = arith.constant 0 : i32
    %c0_i32_0 = arith.constant 0 : i32
    %c0_i32_1 = arith.constant 0 : i32
    return %c0_i32, %c0_i32_0 : i32, i32
  }
  func.func @transform_2(%arg0: i32) -> (i32, i32) {
    %c0_i32 = arith.constant 0 : i32
    %c0_i32_0 = arith.constant 0 : i32
    %c0_i32_1 = arith.constant 0 : i32
    return %c0_i32, %c0_i32_0 : i32, i32
  }
  func.func @transform_3(%arg0: i32) -> (i32, i32) {
    %c0_i32 = arith.constant 0 : i32
    %c0_i32_0 = arith.constant 0 : i32
    %c0_i32_1 = arith.constant 0 : i32
    return %c0_i32, %c0_i32_0 : i32, i32
  }
  func.func @transform_4(%arg0: i32) -> (i32, i32) {
    %c0_i32 = arith.constant 0 : i32
    %c0_i32_0 = arith.constant 0 : i32
    %c0_i32_1 = arith.constant 0 : i32
    return %c0_i32, %c0_i32_0 : i32, i32
  }
  func.func @transform_5(%arg0: i32) -> (i32, i32) {
    %c0_i32 = arith.constant 0 : i32
    %c0_i32_0 = arith.constant 0 : i32
    %c0_i32_1 = arith.constant 0 : i32
    return %c0_i32, %c0_i32_0 : i32, i32
  }
  func.func @transform_6(%arg0: i32) -> (i32, i32) {
    %c0_i32 = arith.constant 0 : i32
    %c0_i32_0 = arith.constant 0 : i32
    %c0_i32_1 = arith.constant 0 : i32
    return %c0_i32, %c0_i32_0 : i32, i32
  }
  func.func @transform_7(%arg0: i32) -> (i32, i32) {
    %c0_i32 = arith.constant 0 : i32
    %c0_i32_0 = arith.constant 0 : i32
    %c0_i32_1 = arith.constant 0 : i32
    return %c0_i32, %c0_i32_0 : i32, i32
  }
  func.func @transform_8(%arg0: i32) -> (i32, i32) {
    %c0_i32 = arith.constant 0 : i32
    %c0_i32_0 = arith.constant 0 : i32
    %c0_i32_1 = arith.constant 0 : i32
    return %c0_i32, %c0_i32_0 : i32, i32
  }
  func.func @transform_9(%arg0: i32) -> (i32, i32) {
    %c0_i32 = arith.constant 0 : i32
    %c0_i32_0 = arith.constant 0 : i32
    return %arg0, %c0_i32 : i32, i32
  }
}

</mosaic_0001>

<llo_original>
// kernel: discriminator_mlp_forward.1
$region0: #{discriminator_mlp_forward.1}
  #allocation0 [shape = 'u32[]', space=smem, size = 0x4, offset = 0x4, fixed_abs, tag = 'smem constant byte address 0x4 - core index']
  #allocation1 [shape = 'u32[144,128]{1,0:T(1,128)}', space=vmem, size = 0x12000, scoped, tag = 'internal scratch']
  #allocation2 [shape = 'f32[1,1]{1,0:T(1,128)S(1)}', space=vmem, size = 0x200, scoped, tag = 'scoped memory for discriminator_mlp_forward.1']
  %s0 = inlined_call_operand.vmem [shape: f32[8,256], index: 0, kind: input, shape index: {}]
  %s1 = inlined_call_operand.vmem [shape: bf16[256,1024], index: 1, kind: input, shape index: {}]
  %s2 = inlined_call_operand.vmem [shape: f32[1,1024], index: 2, kind: input, shape index: {}]
  %s3 = inlined_call_operand.vmem [shape: bf16[1024,512], index: 3, kind: input, shape index: {}]
  %s4 = inlined_call_operand.vmem [shape: f32[1,512], index: 4, kind: input, shape index: {}]
  %s5 = inlined_call_operand.vmem [shape: bf16[512,256], index: 5, kind: input, shape index: {}]
  %s6 = inlined_call_operand.vmem [shape: f32[1,256], index: 6, kind: input, shape index: {}]
  %s7 = inlined_call_operand.vmem [shape: f32[1,256], index: 7, kind: input, shape index: {}]
  %s8 = inlined_call_operand.<no memory space> [shape: f32[1,1], index: 8, kind: input, shape index: {}]
  %s9 = inlined_call_operand.vmem [shape: f32[8,1], index: 9, kind: output, shape index: {}]
  %s10 = sld [smem:[#allocation0]]
  $region46: #{discriminator_mlp_forward.1} parent=0
    _
  %s12 = ssub.s32 1, %s10
  %s13 = scalar_select 0, %s12, %s10
  %v14 = vstv %s8
  %15 = vst [vmem:[#allocation2] sm:$0x1] %v14
  // Predicated region
  $region2: #{discriminator_mlp_forward.1} parent=0 // pred_check
    _
  $region3: #{discriminator_mlp_forward.1} parent=0 // pred_check_branch
    %17 = sbr.rel (0) target = $region5
  $region4: #{discriminator_mlp_forward.1} parent=0 // pred_region
    _
  $region5: #{discriminator_mlp_forward.1} parent=0 // pred_fallthru
    _
  // Predicated region
  $region6: #{discriminator_mlp_forward.1} parent=0 // pred_check
    _
  $region7: #{discriminator_mlp_forward.1} parent=0 // pred_check_branch
    %19 = sbr.rel (0) target = $region9
  $region8: #{discriminator_mlp_forward.1} parent=0 // pred_region
    _
  $region9: #{discriminator_mlp_forward.1} parent=0 // pred_fallthru
    _
  // Predicated region
  $region10: #{discriminator_mlp_forward.1} parent=0 // pred_check
    _
  $region11: #{discriminator_mlp_forward.1} parent=0 // pred_check_branch
    %21 = sbr.rel (0) target = $region13
  $region12: #{discriminator_mlp_forward.1} parent=0 // pred_region
    _
  $region13: #{discriminator_mlp_forward.1} parent=0 // pred_fallthru
    _
  // Predicated region
  $region14: #{discriminator_mlp_forward.1} parent=0 // pred_check
    _
  $region15: #{discriminator_mlp_forward.1} parent=0 // pred_check_branch
    %23 = sbr.rel (0) target = $region17
  $region16: #{discriminator_mlp_forward.1} parent=0 // pred_region
    _
  $region17: #{discriminator_mlp_forward.1} parent=0 // pred_fallthru
    _
  // Predicated region
  $region18: #{discriminator_mlp_forward.1} parent=0 // pred_check
    _
  $region19: #{discriminator_mlp_forward.1} parent=0 // pred_check_branch
    %25 = sbr.rel (0) target = $region21
  $region20: #{discriminator_mlp_forward.1} parent=0 // pred_region
    _
  $region21: #{discriminator_mlp_forward.1} parent=0 // pred_fallthru
    _
  // Predicated region
  $region22: #{discriminator_mlp_forward.1} parent=0 // pred_check
    _
  $region23: #{discriminator_mlp_forward.1} parent=0 // pred_check_branch
    %27 = sbr.rel (0) target = $region25
  $region24: #{discriminator_mlp_forward.1} parent=0 // pred_region
    _
  $region25: #{discriminator_mlp_forward.1} parent=0 // pred_fallthru
    _
  // Predicated region
  $region26: #{discriminator_mlp_forward.1} parent=0 // pred_check
    _
  $region27: #{discriminator_mlp_forward.1} parent=0 // pred_check_branch
    %29 = sbr.rel (0) target = $region29
  $region28: #{discriminator_mlp_forward.1} parent=0 // pred_region
    _
  $region29: #{discriminator_mlp_forward.1} parent=0 // pred_fallthru
    _
  // Predicated region
  $region30: #{discriminator_mlp_forward.1} parent=0 // pred_check
    _
  $region31: #{discriminator_mlp_forward.1} parent=0 // pred_check_branch
    %31 = sbr.rel (0) target = $region33
  $region32: #{discriminator_mlp_forward.1} parent=0 // pred_region
    _
  $region33: #{discriminator_mlp_forward.1} parent=0 // pred_fallthru
    _
  // Predicated region
  $region34: #{discriminator_mlp_forward.1} parent=0 // pred_check
    _
  $region35: #{discriminator_mlp_forward.1} parent=0 // pred_check_branch
    %33 = sbr.rel (0) target = $region37
  $region36: #{discriminator_mlp_forward.1} parent=0 // pred_region
    _
  $region37: #{discriminator_mlp_forward.1} parent=0 // pred_fallthru
    _
  %v34 = vld [vmem:[%s0] sm:$0xff]
  %v35 = vld [vmem:[%s0 + $0x8] sm:$0xff]
  %v36 = vpack.c.bf16 %v34, %v34
  %v37 = vpack.c.bf16 %v35, %v35
  %v38 = vld [vmem:[%s1] sm:$0xff]
  %v39 = vld [vmem:[%s1 + $0x8] sm:$0xff]
  %v40 = vld [vmem:[%s1 + $0x10] sm:$0xff]
  %v41 = vld [vmem:[%s1 + $0x18] sm:$0xff]
  %v42 = vld [vmem:[%s1 + $0x20] sm:$0xff]
  %v43 = vld [vmem:[%s1 + $0x28] sm:$0xff]
  %v44 = vld [vmem:[%s1 + $0x30] sm:$0xff]
  %v45 = vld [vmem:[%s1 + $0x38] sm:$0xff]
  %v46 = vld [vmem:[%s1 + $0x40] sm:$0xff]
  %v47 = vld [vmem:[%s1 + $0x48] sm:$0xff]
  %v48 = vld [vmem:[%s1 + $0x50] sm:$0xff]
  %v49 = vld [vmem:[%s1 + $0x58] sm:$0xff]
  %v50 = vld [vmem:[%s1 + $0x60] sm:$0xff]
  %v51 = vld [vmem:[%s1 + $0x68] sm:$0xff]
  %v52 = vld [vmem:[%s1 + $0x70] sm:$0xff]
  %v53 = vld [vmem:[%s1 + $0x78] sm:$0xff]
  %v54 = vld [vmem:[%s1 + $0x80] sm:$0xff]
  %v55 = vld [vmem:[%s1 + $0x88] sm:$0xff]
  %v56 = vld [vmem:[%s1 + $0x90] sm:$0xff]
  %v57 = vld [vmem:[%s1 + $0x98] sm:$0xff]
  %v58 = vld [vmem:[%s1 + $0xa0] sm:$0xff]
  %v59 = vld [vmem:[%s1 + $0xa8] sm:$0xff]
  %v60 = vld [vmem:[%s1 + $0xb0] sm:$0xff]
  %v61 = vld [vmem:[%s1 + $0xb8] sm:$0xff]
  %v62 = vld [vmem:[%s1 + $0xc0] sm:$0xff]
  %v63 = vld [vmem:[%s1 + $0xc8] sm:$0xff]
  %v64 = vld [vmem:[%s1 + $0xd0] sm:$0xff]
  %v65 = vld [vmem:[%s1 + $0xd8] sm:$0xff]
  %v66 = vld [vmem:[%s1 + $0xe0] sm:$0xff]
  %v67 = vld [vmem:[%s1 + $0xe8] sm:$0xff]
  %v68 = vld [vmem:[%s1 + $0xf0] sm:$0xff]
  %v69 = vld [vmem:[%s1 + $0xf8] sm:$0xff]
  %v70 = vld [vmem:[%s1 + $0x100] sm:$0xff]
  %v71 = vld [vmem:[%s1 + $0x108] sm:$0xff]
  %v72 = vld [vmem:[%s1 + $0x110] sm:$0xff]
  %v73 = vld [vmem:[%s1 + $0x118] sm:$0xff]
  %v74 = vld [vmem:[%s1 + $0x120] sm:$0xff]
  %v75 = vld [vmem:[%s1 + $0x128] sm:$0xff]
  %v76 = vld [vmem:[%s1 + $0x130] sm:$0xff]
  %v77 = vld [vmem:[%s1 + $0x138] sm:$0xff]
  %v78 = vld [vmem:[%s1 + $0x140] sm:$0xff]
  %v79 = vld [vmem:[%s1 + $0x148] sm:$0xff]
  %v80 = vld [vmem:[%s1 + $0x150] sm:$0xff]
  %v81 = vld [vmem:[%s1 + $0x158] sm:$0xff]
  %v82 = vld [vmem:[%s1 + $0x160] sm:$0xff]
  %v83 = vld [vmem:[%s1 + $0x168] sm:$0xff]
  %v84 = vld [vmem:[%s1 + $0x170] sm:$0xff]
  %v85 = vld [vmem:[%s1 + $0x178] sm:$0xff]
  %v86 = vld [vmem:[%s1 + $0x180] sm:$0xff]
  %v87 = vld [vmem:[%s1 + $0x188] sm:$0xff]
  %v88 = vld [vmem:[%s1 + $0x190] sm:$0xff]
  %v89 = vld [vmem:[%s1 + $0x198] sm:$0xff]
  %v90 = vld [vmem:[%s1 + $0x1a0] sm:$0xff]
  %v91 = vld [vmem:[%s1 + $0x1a8] sm:$0xff]
  %v92 = vld [vmem:[%s1 + $0x1b0] sm:$0xff]
  %v93 = vld [vmem:[%s1 + $0x1b8] sm:$0xff]
  %v94 = vld [vmem:[%s1 + $0x1c0] sm:$0xff]
  %v95 = vld [vmem:[%s1 + $0x1c8] sm:$0xff]
  %v96 = vld [vmem:[%s1 + $0x1d0] sm:$0xff]
  %v97 = vld [vmem:[%s1 + $0x1d8] sm:$0xff]
  %v98 = vld [vmem:[%s1 + $0x1e0] sm:$0xff]
  %v99 = vld [vmem:[%s1 + $0x1e8] sm:$0xff]
  %v100 = vld [vmem:[%s1 + $0x1f0] sm:$0xff]
  %v101 = vld [vmem:[%s1 + $0x1f8] sm:$0xff]
  %v102 = vld [vmem:[%s1 + $0x200] sm:$0xff]
  %v103 = vld [vmem:[%s1 + $0x208] sm:$0xff]
  %v104 = vld [vmem:[%s1 + $0x210] sm:$0xff]
  %v105 = vld [vmem:[%s1 + $0x218] sm:$0xff]
  %v106 = vld [vmem:[%s1 + $0x220] sm:$0xff]
  %v107 = vld [vmem:[%s1 + $0x228] sm:$0xff]
  %v108 = vld [vmem:[%s1 + $0x230] sm:$0xff]
  %v109 = vld [vmem:[%s1 + $0x238] sm:$0xff]
  %v110 = vld [vmem:[%s1 + $0x240] sm:$0xff]
  %v111 = vld [vmem:[%s1 + $0x248] sm:$0xff]
  %v112 = vld [vmem:[%s1 + $0x250] sm:$0xff]
  %v113 = vld [vmem:[%s1 + $0x258] sm:$0xff]
  %v114 = vld [vmem:[%s1 + $0x260] sm:$0xff]
  %v115 = vld [vmem:[%s1 + $0x268] sm:$0xff]
  %v116 = vld [vmem:[%s1 + $0x270] sm:$0xff]
  %v117 = vld [vmem:[%s1 + $0x278] sm:$0xff]
  %v118 = vld [vmem:[%s1 + $0x280] sm:$0xff]
  %v119 = vld [vmem:[%s1 + $0x288] sm:$0xff]
  %v120 = vld [vmem:[%s1 + $0x290] sm:$0xff]
  %v121 = vld [vmem:[%s1 + $0x298] sm:$0xff]
  %v122 = vld [vmem:[%s1 + $0x2a0] sm:$0xff]
  %v123 = vld [vmem:[%s1 + $0x2a8] sm:$0xff]
  %v124 = vld [vmem:[%s1 + $0x2b0] sm:$0xff]
  %v125 = vld [vmem:[%s1 + $0x2b8] sm:$0xff]
  %v126 = vld [vmem:[%s1 + $0x2c0] sm:$0xff]
  %v127 = vld [vmem:[%s1 + $0x2c8] sm:$0xff]
  %v128 = vld [vmem:[%s1 + $0x2d0] sm:$0xff]
  %v129 = vld [vmem:[%s1 + $0x2d8] sm:$0xff]
  %v130 = vld [vmem:[%s1 + $0x2e0] sm:$0xff]
  %v131 = vld [vmem:[%s1 + $0x2e8] sm:$0xff]
  %v132 = vld [vmem:[%s1 + $0x2f0] sm:$0xff]
  %v133 = vld [vmem:[%s1 + $0x2f8] sm:$0xff]
  %v134 = vld [vmem:[%s1 + $0x300] sm:$0xff]
  %v135 = vld [vmem:[%s1 + $0x308] sm:$0xff]
  %v136 = vld [vmem:[%s1 + $0x310] sm:$0xff]
  %v137 = vld [vmem:[%s1 + $0x318] sm:$0xff]
  %v138 = vld [vmem:[%s1 + $0x320] sm:$0xff]
  %v139 = vld [vmem:[%s1 + $0x328] sm:$0xff]
  %v140 = vld [vmem:[%s1 + $0x330] sm:$0xff]
  %v141 = vld [vmem:[%s1 + $0x338] sm:$0xff]
  %v142 = vld [vmem:[%s1 + $0x340] sm:$0xff]
  %v143 = vld [vmem:[%s1 + $0x348] sm:$0xff]
  %v144 = vld [vmem:[%s1 + $0x350] sm:$0xff]
  %v145 = vld [vmem:[%s1 + $0x358] sm:$0xff]
  %v146 = vld [vmem:[%s1 + $0x360] sm:$0xff]
  %v147 = vld [vmem:[%s1 + $0x368] sm:$0xff]
  %v148 = vld [vmem:[%s1 + $0x370] sm:$0xff]
  %v149 = vld [vmem:[%s1 + $0x378] sm:$0xff]
  %v150 = vld [vmem:[%s1 + $0x380] sm:$0xff]
  %v151 = vld [vmem:[%s1 + $0x388] sm:$0xff]
  %v152 = vld [vmem:[%s1 + $0x390] sm:$0xff]
  %v153 = vld [vmem:[%s1 + $0x398] sm:$0xff]
  %v154 = vld [vmem:[%s1 + $0x3a0] sm:$0xff]
  %v155 = vld [vmem:[%s1 + $0x3a8] sm:$0xff]
  %v156 = vld [vmem:[%s1 + $0x3b0] sm:$0xff]
  %v157 = vld [vmem:[%s1 + $0x3b8] sm:$0xff]
  %v158 = vld [vmem:[%s1 + $0x3c0] sm:$0xff]
  %v159 = vld [vmem:[%s1 + $0x3c8] sm:$0xff]
  %v160 = vld [vmem:[%s1 + $0x3d0] sm:$0xff]
  %v161 = vld [vmem:[%s1 + $0x3d8] sm:$0xff]
  %v162 = vld [vmem:[%s1 + $0x3e0] sm:$0xff]
  %v163 = vld [vmem:[%s1 + $0x3e8] sm:$0xff]
  %v164 = vld [vmem:[%s1 + $0x3f0] sm:$0xff]
  %v165 = vld [vmem:[%s1 + $0x3f8] sm:$0xff]
  %v166 = vld [vmem:[%s2] sm:$0xff]
  %v168 = vlaneseq
  %v169 = vshrl.u32 %v168, 7
  %v170 = vsub.s32 0, %v169
  %v171 = vrot.slane %v166, %v170
  %v172 = vlaneseq
  %v173 = vshrl.u32 %v172, 7
  %v174 = vsub.s32 1, %v173
  %v175 = vrot.slane %v166, %v174
  %v176 = vlaneseq
  %v177 = vshrl.u32 %v176, 7
  %v178 = vsub.s32 2, %v177
  %v179 = vrot.slane %v166, %v178
  %v180 = vlaneseq
  %v181 = vshrl.u32 %v180, 7
  %v182 = vsub.s32 3, %v181
  %v183 = vrot.slane %v166, %v182
  %v184 = vlaneseq
  %v185 = vshrl.u32 %v184, 7
  %v186 = vsub.s32 4, %v185
  %v187 = vrot.slane %v166, %v186
  %v188 = vlaneseq
  %v189 = vshrl.u32 %v188, 7
  %v190 = vsub.s32 5, %v189
  %v191 = vrot.slane %v166, %v190
  %v192 = vlaneseq
  %v193 = vshrl.u32 %v192, 7
  %v194 = vsub.s32 6, %v193
  %v195 = vrot.slane %v166, %v194
  %v196 = vlaneseq
  %v197 = vshrl.u32 %v196, 7
  %v198 = vsub.s32 7, %v197
  %v199 = vrot.slane %v166, %v198
  %v336 = vunpack.c.l.b16 %v38
  %v337 = vunpack.c.h.b16 %v38
  %v338 = vunpack.c.l.b16 %v39
  %v339 = vunpack.c.h.b16 %v39
  %v340 = vunpack.c.l.b16 %v40
  %v341 = vunpack.c.h.b16 %v40
  %v342 = vunpack.c.l.b16 %v41
  %v343 = vunpack.c.h.b16 %v41
  %v344 = vunpack.c.l.b16 %v42
  %v345 = vunpack.c.h.b16 %v42
  %v346 = vunpack.c.l.b16 %v43
  %v347 = vunpack.c.h.b16 %v43
  %v348 = vunpack.c.l.b16 %v44
  %v349 = vunpack.c.h.b16 %v44
  %v350 = vunpack.c.l.b16 %v45
  %v351 = vunpack.c.h.b16 %v45
  %v352 = vunpack.c.l.b16 %v46
  %v353 = vunpack.c.h.b16 %v46
  %v354 = vunpack.c.l.b16 %v47
  %v355 = vunpack.c.h.b16 %v47
  %v356 = vunpack.c.l.b16 %v48
  %v357 = vunpack.c.h.b16 %v48
  %v358 = vunpack.c.l.b16 %v49
  %v359 = vunpack.c.h.b16 %v49
  %v360 = vunpack.c.l.b16 %v50
  %v361 = vunpack.c.h.b16 %v50
  %v362 = vunpack.c.l.b16 %v51
  %v363 = vunpack.c.h.b16 %v51
  %v364 = vunpack.c.l.b16 %v52
  %v365 = vunpack.c.h.b16 %v52
  %v366 = vunpack.c.l.b16 %v53
  %v367 = vunpack.c.h.b16 %v53
  %v368 = vunpack.c.l.b16 %v54
  %v369 = vunpack.c.h.b16 %v54
  %v370 = vunpack.c.l.b16 %v55
  %v371 = vunpack.c.h.b16 %v55
  %v372 = vunpack.c.l.b16 %v56
  %v373 = vunpack.c.h.b16 %v56
  %v374 = vunpack.c.l.b16 %v57
  %v375 = vunpack.c.h.b16 %v57
  %v376 = vunpack.c.l.b16 %v58
  %v377 = vunpack.c.h.b16 %v58
  %v378 = vunpack.c.l.b16 %v59
  %v379 = vunpack.c.h.b16 %v59
  %v380 = vunpack.c.l.b16 %v60
  %v381 = vunpack.c.h.b16 %v60
  %v382 = vunpack.c.l.b16 %v61
  %v383 = vunpack.c.h.b16 %v61
  %v384 = vunpack.c.l.b16 %v62
  %v385 = vunpack.c.h.b16 %v62
  %v386 = vunpack.c.l.b16 %v63
  %v387 = vunpack.c.h.b16 %v63
  %v388 = vunpack.c.l.b16 %v64
  %v389 = vunpack.c.h.b16 %v64
  %v390 = vunpack.c.l.b16 %v65
  %v391 = vunpack.c.h.b16 %v65
  %v392 = vunpack.c.l.b16 %v66
  %v393 = vunpack.c.h.b16 %v66
  %v394 = vunpack.c.l.b16 %v67
  %v395 = vunpack.c.h.b16 %v67
  %v396 = vunpack.c.l.b16 %v68
  %v397 = vunpack.c.h.b16 %v68
  %v398 = vunpack.c.l.b16 %v69
  %v399 = vunpack.c.h.b16 %v69
  %v400 = vunpack.c.l.b16 %v70
  %v401 = vunpack.c.h.b16 %v70
  %v402 = vunpack.c.l.b16 %v71
  %v403 = vunpack.c.h.b16 %v71
  %v404 = vunpack.c.l.b16 %v72
  %v405 = vunpack.c.h.b16 %v72
  %v406 = vunpack.c.l.b16 %v73
  %v407 = vunpack.c.h.b16 %v73
  %v408 = vunpack.c.l.b16 %v74
  %v409 = vunpack.c.h.b16 %v74
  %v410 = vunpack.c.l.b16 %v75
  %v411 = vunpack.c.h.b16 %v75
  %v412 = vunpack.c.l.b16 %v76
  %v413 = vunpack.c.h.b16 %v76
  %v414 = vunpack.c.l.b16 %v77
  %v415 = vunpack.c.h.b16 %v77
  %v416 = vunpack.c.l.b16 %v78
  %v417 = vunpack.c.h.b16 %v78
  %v418 = vunpack.c.l.b16 %v79
  %v419 = vunpack.c.h.b16 %v79
  %v420 = vunpack.c.l.b16 %v80
  %v421 = vunpack.c.h.b16 %v80
  %v422 = vunpack.c.l.b16 %v81
  %v423 = vunpack.c.h.b16 %v81
  %v424 = vunpack.c.l.b16 %v82
  %v425 = vunpack.c.h.b16 %v82
  %v426 = vunpack.c.l.b16 %v83
  %v427 = vunpack.c.h.b16 %v83
  %v428 = vunpack.c.l.b16 %v84
  %v429 = vunpack.c.h.b16 %v84
  %v430 = vunpack.c.l.b16 %v85
  %v431 = vunpack.c.h.b16 %v85
  %v432 = vunpack.c.l.b16 %v86
  %v433 = vunpack.c.h.b16 %v86
  %v434 = vunpack.c.l.b16 %v87
  %v435 = vunpack.c.h.b16 %v87
  %v436 = vunpack.c.l.b16 %v88
  %v437 = vunpack.c.h.b16 %v88
  %v438 = vunpack.c.l.b16 %v89
  %v439 = vunpack.c.h.b16 %v89
  %v440 = vunpack.c.l.b16 %v90
  %v441 = vunpack.c.h.b16 %v90
  %v442 = vunpack.c.l.b16 %v91
  %v443 = vunpack.c.h.b16 %v91
  %v444 = vunpack.c.l.b16 %v92
  %v445 = vunpack.c.h.b16 %v92
  %v446 = vunpack.c.l.b16 %v93
  %v447 = vunpack.c.h.b16 %v93
  %v448 = vunpack.c.l.b16 %v94
  %v449 = vunpack.c.h.b16 %v94
  %v450 = vunpack.c.l.b16 %v95
  %v451 = vunpack.c.h.b16 %v95
  %v452 = vunpack.c.l.b16 %v96
  %v453 = vunpack.c.h.b16 %v96
  %v454 = vunpack.c.l.b16 %v97
  %v455 = vunpack.c.h.b16 %v97
  %v456 = vunpack.c.l.b16 %v98
  %v457 = vunpack.c.h.b16 %v98
  %v458 = vunpack.c.l.b16 %v99
  %v459 = vunpack.c.h.b16 %v99
  %v460 = vunpack.c.l.b16 %v100
  %v461 = vunpack.c.h.b16 %v100
  %v462 = vunpack.c.l.b16 %v101
  %v463 = vunpack.c.h.b16 %v101
  %v464 = vunpack.c.l.b16 %v102
  %v465 = vunpack.c.h.b16 %v102
  %v466 = vunpack.c.l.b16 %v103
  %v467 = vunpack.c.h.b16 %v103
  %v468 = vunpack.c.l.b16 %v104
  %v469 = vunpack.c.h.b16 %v104
  %v470 = vunpack.c.l.b16 %v105
  %v471 = vunpack.c.h.b16 %v105
  %v472 = vunpack.c.l.b16 %v106
  %v473 = vunpack.c.h.b16 %v106
  %v474 = vunpack.c.l.b16 %v107
  %v475 = vunpack.c.h.b16 %v107
  %v476 = vunpack.c.l.b16 %v108
  %v477 = vunpack.c.h.b16 %v108
  %v478 = vunpack.c.l.b16 %v109
  %v479 = vunpack.c.h.b16 %v109
  %v480 = vunpack.c.l.b16 %v110
  %v481 = vunpack.c.h.b16 %v110
  %v482 = vunpack.c.l.b16 %v111
  %v483 = vunpack.c.h.b16 %v111
  %v484 = vunpack.c.l.b16 %v112
  %v485 = vunpack.c.h.b16 %v112
  %v486 = vunpack.c.l.b16 %v113
  %v487 = vunpack.c.h.b16 %v113
  %v488 = vunpack.c.l.b16 %v114
  %v489 = vunpack.c.h.b16 %v114
  %v490 = vunpack.c.l.b16 %v115
  %v491 = vunpack.c.h.b16 %v115
  %v492 = vunpack.c.l.b16 %v116
  %v493 = vunpack.c.h.b16 %v116
  %v494 = vunpack.c.l.b16 %v117
  %v495 = vunpack.c.h.b16 %v117
  %v496 = vunpack.c.l.b16 %v118
  %v497 = vunpack.c.h.b16 %v118
  %v498 = vunpack.c.l.b16 %v119
  %v499 = vunpack.c.h.b16 %v119
  %v500 = vunpack.c.l.b16 %v120
  %v501 = vunpack.c.h.b16 %v120
  %v502 = vunpack.c.l.b16 %v121
  %v503 = vunpack.c.h.b16 %v121
  %v504 = vunpack.c.l.b16 %v122
  %v505 = vunpack.c.h.b16 %v122
  %v506 = vunpack.c.l.b16 %v123
  %v507 = vunpack.c.h.b16 %v123
  %v508 = vunpack.c.l.b16 %v124
  %v509 = vunpack.c.h.b16 %v124
  %v510 = vunpack.c.l.b16 %v125
  %v511 = vunpack.c.h.b16 %v125
  %v512 = vunpack.c.l.b16 %v126
  %v513 = vunpack.c.h.b16 %v126
  %v514 = vunpack.c.l.b16 %v127
  %v515 = vunpack.c.h.b16 %v127
  %v516 = vunpack.c.l.b16 %v128
  %v517 = vunpack.c.h.b16 %v128
  %v518 = vunpack.c.l.b16 %v129
  %v519 = vunpack.c.h.b16 %v129
  %v520 = vunpack.c.l.b16 %v130
  %v521 = vunpack.c.h.b16 %v130
  %v522 = vunpack.c.l.b16 %v131
  %v523 = vunpack.c.h.b16 %v131
  %v524 = vunpack.c.l.b16 %v132
  %v525 = vunpack.c.h.b16 %v132
  %v526 = vunpack.c.l.b16 %v133
  %v527 = vunpack.c.h.b16 %v133
  %v528 = vunpack.c.l.b16 %v134
  %v529 = vunpack.c.h.b16 %v134
  %v530 = vunpack.c.l.b16 %v135
  %v531 = vunpack.c.h.b16 %v135
  %v532 = vunpack.c.l.b16 %v136
  %v533 = vunpack.c.h.b16 %v136
  %v534 = vunpack.c.l.b16 %v137
  %v535 = vunpack.c.h.b16 %v137
  %v536 = vunpack.c.l.b16 %v138
  %v537 = vunpack.c.h.b16 %v138
  %v538 = vunpack.c.l.b16 %v139
  %v539 = vunpack.c.h.b16 %v139
  %v540 = vunpack.c.l.b16 %v140
  %v541 = vunpack.c.h.b16 %v140
  %v542 = vunpack.c.l.b16 %v141
  %v543 = vunpack.c.h.b16 %v141
  %v544 = vunpack.c.l.b16 %v142
  %v545 = vunpack.c.h.b16 %v142
  %v546 = vunpack.c.l.b16 %v143
  %v547 = vunpack.c.h.b16 %v143
  %v548 = vunpack.c.l.b16 %v144
  %v549 = vunpack.c.h.b16 %v144
  %v550 = vunpack.c.l.b16 %v145
  %v551 = vunpack.c.h.b16 %v145
  %v552 = vunpack.c.l.b16 %v146
  %v553 = vunpack.c.h.b16 %v146
  %v554 = vunpack.c.l.b16 %v147
  %v555 = vunpack.c.h.b16 %v147
  %v556 = vunpack.c.l.b16 %v148
  %v557 = vunpack.c.h.b16 %v148
  %v558 = vunpack.c.l.b16 %v149
  %v559 = vunpack.c.h.b16 %v149
  %v560 = vunpack.c.l.b16 %v150
  %v561 = vunpack.c.h.b16 %v150
  %v562 = vunpack.c.l.b16 %v151
  %v563 = vunpack.c.h.b16 %v151
  %v564 = vunpack.c.l.b16 %v152
  %v565 = vunpack.c.h.b16 %v152
  %v566 = vunpack.c.l.b16 %v153
  %v567 = vunpack.c.h.b16 %v153
  %v568 = vunpack.c.l.b16 %v154
  %v569 = vunpack.c.h.b16 %v154
  %v570 = vunpack.c.l.b16 %v155
  %v571 = vunpack.c.h.b16 %v155
  %v572 = vunpack.c.l.b16 %v156
  %v573 = vunpack.c.h.b16 %v156
  %v574 = vunpack.c.l.b16 %v157
  %v575 = vunpack.c.h.b16 %v157
  %v576 = vunpack.c.l.b16 %v158
  %v577 = vunpack.c.h.b16 %v158
  %v578 = vunpack.c.l.b16 %v159
  %v579 = vunpack.c.h.b16 %v159
  %v580 = vunpack.c.l.b16 %v160
  %v581 = vunpack.c.h.b16 %v160
  %v582 = vunpack.c.l.b16 %v161
  %v583 = vunpack.c.h.b16 %v161
  %v584 = vunpack.c.l.b16 %v162
  %v585 = vunpack.c.h.b16 %v162
  %v586 = vunpack.c.l.b16 %v163
  %v587 = vunpack.c.h.b16 %v163
  %v588 = vunpack.c.l.b16 %v164
  %v589 = vunpack.c.h.b16 %v164
  %v590 = vunpack.c.l.b16 %v165
  %v591 = vunpack.c.h.b16 %v165
  %v592 = vpack.c.b16 %v344, %v336
  %v593 = vpack.c.b16 %v345, %v337
  %v594 = vpack.c.b16 %v346, %v338
  %v595 = vpack.c.b16 %v347, %v339
  %v596 = vpack.c.b16 %v348, %v340
  %v597 = vpack.c.b16 %v349, %v341
  %v598 = vpack.c.b16 %v350, %v342
  %v599 = vpack.c.b16 %v351, %v343
  %v600 = vpack.c.b16 %v360, %v352
  %v601 = vpack.c.b16 %v361, %v353
  %v602 = vpack.c.b16 %v362, %v354
  %v603 = vpack.c.b16 %v363, %v355
  %v604 = vpack.c.b16 %v364, %v356
  %v605 = vpack.c.b16 %v365, %v357
  %v606 = vpack.c.b16 %v366, %v358
  %v607 = vpack.c.b16 %v367, %v359
  %v608 = vpack.c.b16 %v376, %v368
  %v609 = vpack.c.b16 %v377, %v369
  %v610 = vpack.c.b16 %v378, %v370
  %v611 = vpack.c.b16 %v379, %v371
  %v612 = vpack.c.b16 %v380, %v372
  %v613 = vpack.c.b16 %v381, %v373
  %v614 = vpack.c.b16 %v382, %v374
  %v615 = vpack.c.b16 %v383, %v375
  %v616 = vpack.c.b16 %v392, %v384
  %v617 = vpack.c.b16 %v393, %v385
  %v618 = vpack.c.b16 %v394, %v386
  %v619 = vpack.c.b16 %v395, %v387
  %v620 = vpack.c.b16 %v396, %v388
  %v621 = vpack.c.b16 %v397, %v389
  %v622 = vpack.c.b16 %v398, %v390
  %v623 = vpack.c.b16 %v399, %v391
  %v624 = vpack.c.b16 %v408, %v400
  %v625 = vpack.c.b16 %v409, %v401
  %v626 = vpack.c.b16 %v410, %v402
  %v627 = vpack.c.b16 %v411, %v403
  %v628 = vpack.c.b16 %v412, %v404
  %v629 = vpack.c.b16 %v413, %v405
  %v630 = vpack.c.b16 %v414, %v406
  %v631 = vpack.c.b16 %v415, %v407
  %v632 = vpack.c.b16 %v424, %v416
  %v633 = vpack.c.b16 %v425, %v417
  %v634 = vpack.c.b16 %v426, %v418
  %v635 = vpack.c.b16 %v427, %v419
  %v636 = vpack.c.b16 %v428, %v420
  %v637 = vpack.c.b16 %v429, %v421
  %v638 = vpack.c.b16 %v430, %v422
  %v639 = vpack.c.b16 %v431, %v423
  %v640 = vpack.c.b16 %v440, %v432
  %v641 = vpack.c.b16 %v441, %v433
  %v642 = vpack.c.b16 %v442, %v434
  %v643 = vpack.c.b16 %v443, %v435
  %v644 = vpack.c.b16 %v444, %v436
  %v645 = vpack.c.b16 %v445, %v437
  %v646 = vpack.c.b16 %v446, %v438
  %v647 = vpack.c.b16 %v447, %v439
  %v648 = vpack.c.b16 %v456, %v448
  %v649 = vpack.c.b16 %v457, %v449
  %v650 = vpack.c.b16 %v458, %v450
  %v651 = vpack.c.b16 %v459, %v451
  %v652 = vpack.c.b16 %v460, %v452
  %v653 = vpack.c.b16 %v461, %v453
  %v654 = vpack.c.b16 %v462, %v454
  %v655 = vpack.c.b16 %v463, %v455
  %v656 = vpack.c.b16 %v472, %v464
  %v657 = vpack.c.b16 %v473, %v465
  %v658 = vpack.c.b16 %v474, %v466
  %v659 = vpack.c.b16 %v475, %v467
  %v660 = vpack.c.b16 %v476, %v468
  %v661 = vpack.c.b16 %v477, %v469
  %v662 = vpack.c.b16 %v478, %v470
  %v663 = vpack.c.b16 %v479, %v471
  %v664 = vpack.c.b16 %v488, %v480
  %v665 = vpack.c.b16 %v489, %v481
  %v666 = vpack.c.b16 %v490, %v482
  %v667 = vpack.c.b16 %v491, %v483
  %v668 = vpack.c.b16 %v492, %v484
  %v669 = vpack.c.b16 %v493, %v485
  %v670 = vpack.c.b16 %v494, %v486
  %v671 = vpack.c.b16 %v495, %v487
  %v672 = vpack.c.b16 %v504, %v496
  %v673 = vpack.c.b16 %v505, %v497
  %v674 = vpack.c.b16 %v506, %v498
  %v675 = vpack.c.b16 %v507, %v499
  %v676 = vpack.c.b16 %v508, %v500
  %v677 = vpack.c.b16 %v509, %v501
  %v678 = vpack.c.b16 %v510, %v502
  %v679 = vpack.c.b16 %v511, %v503
  %v680 = vpack.c.b16 %v520, %v512
  %v681 = vpack.c.b16 %v521, %v513
  %v682 = vpack.c.b16 %v522, %v514
  %v683 = vpack.c.b16 %v523, %v515
  %v684 = vpack.c.b16 %v524, %v516
  %v685 = vpack.c.b16 %v525, %v517
  %v686 = vpack.c.b16 %v526, %v518
  %v687 = vpack.c.b16 %v527, %v519
  %v688 = vpack.c.b16 %v536, %v528
  %v689 = vpack.c.b16 %v537, %v529
  %v690 = vpack.c.b16 %v538, %v530
  %v691 = vpack.c.b16 %v539, %v531
  %v692 = vpack.c.b16 %v540, %v532
  %v693 = vpack.c.b16 %v541, %v533
  %v694 = vpack.c.b16 %v542, %v534
  %v695 = vpack.c.b16 %v543, %v535
  %v696 = vpack.c.b16 %v552, %v544
  %v697 = vpack.c.b16 %v553, %v545
  %v698 = vpack.c.b16 %v554, %v546
  %v699 = vpack.c.b16 %v555, %v547
  %v700 = vpack.c.b16 %v556, %v548
  %v701 = vpack.c.b16 %v557, %v549
  %v702 = vpack.c.b16 %v558, %v550
  %v703 = vpack.c.b16 %v559, %v551
  %v704 = vpack.c.b16 %v568, %v560
  %v705 = vpack.c.b16 %v569, %v561
  %v706 = vpack.c.b16 %v570, %v562
  %v707 = vpack.c.b16 %v571, %v563
  %v708 = vpack.c.b16 %v572, %v564
  %v709 = vpack.c.b16 %v573, %v565
  %v710 = vpack.c.b16 %v574, %v566
  %v711 = vpack.c.b16 %v575, %v567
  %v712 = vpack.c.b16 %v584, %v576
  %v713 = vpack.c.b16 %v585, %v577
  %v714 = vpack.c.b16 %v586, %v578
  %v715 = vpack.c.b16 %v587, %v579
  %v716 = vpack.c.b16 %v588, %v580
  %v717 = vpack.c.b16 %v589, %v581
  %v718 = vpack.c.b16 %v590, %v582
  %v719 = vpack.c.b16 %v591, %v583
  %848 = vmatprep.subr.bf16.mxu0 %v593
  %849 = vmatpush1.bf16.msra.mxu0 %v592
  %850 = vmatprep.subr.bf16.mxu0 %v601
  %851 = vmatpush1.bf16.msra.mxu0 %v600
  %852 = vmatprep.subr.bf16.mxu0 %v609
  %853 = vmatpush1.bf16.msra.mxu0 %v608
  %854 = vmatprep.subr.bf16.mxu0 %v617
  %855 = vmatpush1.bf16.msra.mxu0 %v616
  %856 = vmatprep.subr.bf16.mxu0 %v625
  %857 = vmatpush1.bf16.msra.mxu0 %v624
  %858 = vmatprep.subr.bf16.mxu0 %v633
  %859 = vmatpush1.bf16.msra.mxu0 %v632
  %860 = vmatprep.subr.bf16.mxu0 %v641
  %861 = vmatpush1.bf16.msra.mxu0 %v640
  %862 = vmatprep.subr.bf16.mxu0 %v649
  %863 = vmatpush1.bf16.msra.mxu0 %v648
  %864 = vmatprep.subr.bf16.mxu0 %v657
  %865 = vmatpush1.bf16.msra.mxu0 %v656
  %866 = vmatprep.subr.bf16.mxu0 %v665
  %867 = vmatpush1.bf16.msra.mxu0 %v664
  %868 = vmatprep.subr.bf16.mxu0 %v673
  %869 = vmatpush1.bf16.msra.mxu0 %v672
  %870 = vmatprep.subr.bf16.mxu0 %v681
  %871 = vmatpush1.bf16.msra.mxu0 %v680
  %872 = vmatprep.subr.bf16.mxu0 %v689
  %873 = vmatpush1.bf16.msra.mxu0 %v688
  %874 = vmatprep.subr.bf16.mxu0 %v697
  %875 = vmatpush1.bf16.msra.mxu0 %v696
  %876 = vmatprep.subr.bf16.mxu0 %v705
  %877 = vmatpush1.bf16.msra.mxu0 %v704
  %878 = vmatprep.subr.bf16.mxu0 %v713
  %879 = vmatpush1.bf16.msra.mxu0 %v712
  %880 = vmatprep.mubr.bf16.mxu0 %v37
  %881 = vmatmul.mubr.bf16.gmra.mrb[0].mxu0 %v36
  %v882 = vpop.f32.mrb[0].mxu0
  %v883 = vadd.f32 %v171, %v882
  %v884 = vpop.f32.mrb[0].mxu0
  %v885 = vadd.f32 %v175, %v884
  %v886 = vpop.f32.mrb[0].mxu0
  %v887 = vpop.f32.mrb[0].mxu0
  %888 = vdwg.mxu0
  %889 = vmatprep.subr.bf16.mxu0 %v595
  %890 = vmatpush1.bf16.msra.mxu0 %v594
  %891 = vmatprep.subr.bf16.mxu0 %v603
  %892 = vmatpush1.bf16.msra.mxu0 %v602
  %893 = vmatprep.subr.bf16.mxu0 %v611
  %894 = vmatpush1.bf16.msra.mxu0 %v610
  %895 = vmatprep.subr.bf16.mxu0 %v619
  %896 = vmatpush1.bf16.msra.mxu0 %v618
  %897 = vmatprep.subr.bf16.mxu0 %v627
  %898 = vmatpush1.bf16.msra.mxu0 %v626
  %899 = vmatprep.subr.bf16.mxu0 %v635
  %900 = vmatpush1.bf16.msra.mxu0 %v634
  %901 = vmatprep.subr.bf16.mxu0 %v643
  %902 = vmatpush1.bf16.msra.mxu0 %v642
  %903 = vmatprep.subr.bf16.mxu0 %v651
  %904 = vmatpush1.bf16.msra.mxu0 %v650
  %905 = vmatprep.subr.bf16.mxu0 %v659
  %906 = vmatpush1.bf16.msra.mxu0 %v658
  %907 = vmatprep.subr.bf16.mxu0 %v667
  %908 = vmatpush1.bf16.msra.mxu0 %v666
  %909 = vmatprep.subr.bf16.mxu0 %v675
  %910 = vmatpush1.bf16.msra.mxu0 %v674
  %911 = vmatprep.subr.bf16.mxu0 %v683
  %912 = vmatpush1.bf16.msra.mxu0 %v682
  %913 = vmatprep.subr.bf16.mxu0 %v691
  %914 = vmatpush1.bf16.msra.mxu0 %v690
  %915 = vmatprep.subr.bf16.mxu0 %v699
  %916 = vmatpush1.bf16.msra.mxu0 %v698
  %917 = vmatprep.subr.bf16.mxu0 %v707
  %918 = vmatpush1.bf16.msra.mxu0 %v706
  %919 = vmatprep.subr.bf16.mxu0 %v715
  %920 = vmatpush1.bf16.msra.mxu0 %v714
  %921 = vmatprep.mubr.bf16.mxu0 %v37
  %922 = vmatmul.mubr.bf16.gmra.mrb[0].mxu0 %v36
  %v923 = vpop.f32.mrb[0].mxu0
  %v924 = vadd.f32 %v179, %v923
  %v925 = vpop.f32.mrb[0].mxu0
  %v926 = vadd.f32 %v183, %v925
  %v927 = vpop.f32.mrb[0].mxu0
  %v928 = vpop.f32.mrb[0].mxu0
  %929 = vdwg.mxu0
  %930 = vmatprep.subr.bf16.mxu0 %v597
  %931 = vmatpush1.bf16.msra.mxu0 %v596
  %932 = vmatprep.subr.bf16.mxu0 %v605
  %933 = vmatpush1.bf16.msra.mxu0 %v604
  %934 = vmatprep.subr.bf16.mxu0 %v613
  %935 = vmatpush1.bf16.msra.mxu0 %v612
  %936 = vmatprep.subr.bf16.mxu0 %v621
  %937 = vmatpush1.bf16.msra.mxu0 %v620
  %938 = vmatprep.subr.bf16.mxu0 %v629
  %939 = vmatpush1.bf16.msra.mxu0 %v628
  %940 = vmatprep.subr.bf16.mxu0 %v637
  %941 = vmatpush1.bf16.msra.mxu0 %v636
  %942 = vmatprep.subr.bf16.mxu0 %v645
  %943 = vmatpush1.bf16.msra.mxu0 %v644
  %944 = vmatprep.subr.bf16.mxu0 %v653
  %945 = vmatpush1.bf16.msra.mxu0 %v652
  %946 = vmatprep.subr.bf16.mxu0 %v661
  %947 = vmatpush1.bf16.msra.mxu0 %v660
  %948 = vmatprep.subr.bf16.mxu0 %v669
  %949 = vmatpush1.bf16.msra.mxu0 %v668
  %950 = vmatprep.subr.bf16.mxu0 %v677
  %951 = vmatpush1.bf16.msra.mxu0 %v676
  %952 = vmatprep.subr.bf16.mxu0 %v685
  %953 = vmatpush1.bf16.msra.mxu0 %v684
  %954 = vmatprep.subr.bf16.mxu0 %v693
  %955 = vmatpush1.bf16.msra.mxu0 %v692
  %956 = vmatprep.subr.bf16.mxu0 %v701
  %957 = vmatpush1.bf16.msra.mxu0 %v700
  %958 = vmatprep.subr.bf16.mxu0 %v709
  %959 = vmatpush1.bf16.msra.mxu0 %v708
  %960 = vmatprep.subr.bf16.mxu0 %v717
  %961 = vmatpush1.bf16.msra.mxu0 %v716
  %962 = vmatprep.mubr.bf16.mxu0 %v37
  %963 = vmatmul.mubr.bf16.gmra.mrb[0].mxu0 %v36
  %v964 = vpop.f32.mrb[0].mxu0
  %v965 = vadd.f32 %v187, %v964
  %v966 = vpop.f32.mrb[0].mxu0
  %v967 = vadd.f32 %v191, %v966
  %v968 = vpop.f32.mrb[0].mxu0
  %v969 = vpop.f32.mrb[0].mxu0
  %970 = vdwg.mxu0
  %971 = vmatprep.subr.bf16.mxu0 %v599
  %972 = vmatpush1.bf16.msra.mxu0 %v598
  %973 = vmatprep.subr.bf16.mxu0 %v607
  %974 = vmatpush1.bf16.msra.mxu0 %v606
  %975 = vmatprep.subr.bf16.mxu0 %v615
  %976 = vmatpush1.bf16.msra.mxu0 %v614
  %977 = vmatprep.subr.bf16.mxu0 %v623
  %978 = vmatpush1.bf16.msra.mxu0 %v622
  %979 = vmatprep.subr.bf16.mxu0 %v631
  %980 = vmatpush1.bf16.msra.mxu0 %v630
  %981 = vmatprep.subr.bf16.mxu0 %v639
  %982 = vmatpush1.bf16.msra.mxu0 %v638
  %983 = vmatprep.subr.bf16.mxu0 %v647
  %984 = vmatpush1.bf16.msra.mxu0 %v646
  %985 = vmatprep.subr.bf16.mxu0 %v655
  %986 = vmatpush1.bf16.msra.mxu0 %v654
  %987 = vmatprep.subr.bf16.mxu0 %v663
  %988 = vmatpush1.bf16.msra.mxu0 %v662
  %989 = vmatprep.subr.bf16.mxu0 %v671
  %990 = vmatpush1.bf16.msra.mxu0 %v670
  %991 = vmatprep.subr.bf16.mxu0 %v679
  %992 = vmatpush1.bf16.msra.mxu0 %v678
  %993 = vmatprep.subr.bf16.mxu0 %v687
  %994 = vmatpush1.bf16.msra.mxu0 %v686
  %995 = vmatprep.subr.bf16.mxu0 %v695
  %996 = vmatpush1.bf16.msra.mxu0 %v694
  %997 = vmatprep.subr.bf16.mxu0 %v703
  %998 = vmatpush1.bf16.msra.mxu0 %v702
  %999 = vmatprep.subr.bf16.mxu0 %v711
  %1000 = vmatpush1.bf16.msra.mxu0 %v710
  %1001 = vmatprep.subr.bf16.mxu0 %v719
  %1002 = vmatpush1.bf16.msra.mxu0 %v718
  %1003 = vmatprep.mubr.bf16.mxu0 %v37
  %1004 = vmatmul.mubr.bf16.gmra.mrb[0].mxu0 %v36
  %v1005 = vpop.f32.mrb[0].mxu0
  %v1006 = vadd.f32 %v195, %v1005
  %v1007 = vpop.f32.mrb[0].mxu0
  %v1008 = vadd.f32 %v199, %v1007
  %v1009 = vpop.f32.mrb[0].mxu0
  %v1010 = vpop.f32.mrb[0].mxu0
  %1011 = vdwg.mxu0
  %vm1012 = vcmp.gt.f32.partialorder %v883, 0.0
  %vm1013 = vcmp.gt.f32.partialorder %v885, 0.0
  %vm1014 = vcmp.gt.f32.partialorder %v924, 0.0
  %vm1015 = vcmp.gt.f32.partialorder %v926, 0.0
  %vm1016 = vcmp.gt.f32.partialorder %v965, 0.0
  %vm1017 = vcmp.gt.f32.partialorder %v967, 0.0
  %vm1018 = vcmp.gt.f32.partialorder %v1006, 0.0
  %vm1019 = vcmp.gt.f32.partialorder %v1008, 0.0
  %v1020 = vmul.f32 %v883, 0.1
  %v1021 = vmul.f32 %v885, 0.1
  %v1022 = vmul.f32 %v924, 0.1
  %v1023 = vmul.f32 %v926, 0.1
  %v1024 = vmul.f32 %v965, 0.1
  %v1025 = vmul.f32 %v967, 0.1
  %v1026 = vmul.f32 %v1006, 0.1
  %v1027 = vmul.f32 %v1008, 0.1
  %v1028 = vsel %vm1012, %v883, %v1020
  %v1029 = vsel %vm1013, %v885, %v1021
  %v1030 = vsel %vm1014, %v924, %v1022
  %v1031 = vsel %vm1015, %v926, %v1023
  %v1032 = vsel %vm1016, %v965, %v1024
  %v1033 = vsel %vm1017, %v967, %v1025
  %v1034 = vsel %vm1018, %v1006, %v1026
  %v1035 = vsel %vm1019, %v1008, %v1027
  %v1036 = vpack.c.bf16 %v1028, %v1028
  %v1037 = vpack.c.bf16 %v1029, %v1029
  %v1038 = vpack.c.bf16 %v1030, %v1030
  %v1039 = vpack.c.bf16 %v1031, %v1031
  %v1040 = vpack.c.bf16 %v1032, %v1032
  %v1041 = vpack.c.bf16 %v1033, %v1033
  %v1042 = vpack.c.bf16 %v1034, %v1034
  %v1043 = vpack.c.bf16 %v1035, %v1035
  %v1044 = vld [vmem:[%s3] sm:$0xff]
  %v1045 = vld [vmem:[%s3 + $0x8] sm:$0xff]
  %v1046 = vld [vmem:[%s3 + $0x10] sm:$0xff]
  %v1047 = vld [vmem:[%s3 + $0x18] sm:$0xff]
  %v1048 = vld [vmem:[%s3 + $0x20] sm:$0xff]
  %v1049 = vld [vmem:[%s3 + $0x28] sm:$0xff]
  %v1050 = vld [vmem:[%s3 + $0x30] sm:$0xff]
  %v1051 = vld [vmem:[%s3 + $0x38] sm:$0xff]
  %v1052 = vld [vmem:[%s3 + $0x40] sm:$0xff]
  %v1053 = vld [vmem:[%s3 + $0x48] sm:$0xff]
  %v1054 = vld [vmem:[%s3 + $0x50] sm:$0xff]
  %v1055 = vld [vmem:[%s3 + $0x58] sm:$0xff]
  %v1056 = vld [vmem:[%s3 + $0x60] sm:$0xff]
  %v1057 = vld [vmem:[%s3 + $0x68] sm:$0xff]
  %v1058 = vld [vmem:[%s3 + $0x70] sm:$0xff]
  %v1059 = vld [vmem:[%s3 + $0x78] sm:$0xff]
  %v1060 = vld [vmem:[%s3 + $0x80] sm:$0xff]
  %v1061 = vld [vmem:[%s3 + $0x88] sm:$0xff]
  %v1062 = vld [vmem:[%s3 + $0x90] sm:$0xff]
  %v1063 = vld [vmem:[%s3 + $0x98] sm:$0xff]
  %v1064 = vld [vmem:[%s3 + $0xa0] sm:$0xff]
  %v1065 = vld [vmem:[%s3 + $0xa8] sm:$0xff]
  %v1066 = vld [vmem:[%s3 + $0xb0] sm:$0xff]
  %v1067 = vld [vmem:[%s3 + $0xb8] sm:$0xff]
  %v1068 = vld [vmem:[%s3 + $0xc0] sm:$0xff]
  %v1069 = vld [vmem:[%s3 + $0xc8] sm:$0xff]
  %v1070 = vld [vmem:[%s3 + $0xd0] sm:$0xff]
  %v1071 = vld [vmem:[%s3 + $0xd8] sm:$0xff]
  %v1072 = vld [vmem:[%s3 + $0xe0] sm:$0xff]
  %v1073 = vld [vmem:[%s3 + $0xe8] sm:$0xff]
  %v1074 = vld [vmem:[%s3 + $0xf0] sm:$0xff]
  %v1075 = vld [vmem:[%s3 + $0xf8] sm:$0xff]
  %v1076 = vld [vmem:[%s3 + $0x100] sm:$0xff]
  %v1077 = vld [vmem:[%s3 + $0x108] sm:$0xff]
  %v1078 = vld [vmem:[%s3 + $0x110] sm:$0xff]
  %v1079 = vld [vmem:[%s3 + $0x118] sm:$0xff]
  %v1080 = vld [vmem:[%s3 + $0x120] sm:$0xff]
  %v1081 = vld [vmem:[%s3 + $0x128] sm:$0xff]
  %v1082 = vld [vmem:[%s3 + $0x130] sm:$0xff]
  %v1083 = vld [vmem:[%s3 + $0x138] sm:$0xff]
  %v1084 = vld [vmem:[%s3 + $0x140] sm:$0xff]
  %v1085 = vld [vmem:[%s3 + $0x148] sm:$0xff]
  %v1086 = vld [vmem:[%s3 + $0x150] sm:$0xff]
  %v1087 = vld [vmem:[%s3 + $0x158] sm:$0xff]
  %v1088 = vld [vmem:[%s3 + $0x160] sm:$0xff]
  %v1089 = vld [vmem:[%s3 + $0x168] sm:$0xff]
  %v1090 = vld [vmem:[%s3 + $0x170] sm:$0xff]
  %v1091 = vld [vmem:[%s3 + $0x178] sm:$0xff]
  %v1092 = vld [vmem:[%s3 + $0x180] sm:$0xff]
  %v1093 = vld [vmem:[%s3 + $0x188] sm:$0xff]
  %v1094 = vld [vmem:[%s3 + $0x190] sm:$0xff]
  %v1095 = vld [vmem:[%s3 + $0x198] sm:$0xff]
  %v1096 = vld [vmem:[%s3 + $0x1a0] sm:$0xff]
  %v1097 = vld [vmem:[%s3 + $0x1a8] sm:$0xff]
  %v1098 = vld [vmem:[%s3 + $0x1b0] sm:$0xff]
  %v1099 = vld [vmem:[%s3 + $0x1b8] sm:$0xff]
  %v1100 = vld [vmem:[%s3 + $0x1c0] sm:$0xff]
  %v1101 = vld [vmem:[%s3 + $0x1c8] sm:$0xff]
  %v1102 = vld [vmem:[%s3 + $0x1d0] sm:$0xff]
  %v1103 = vld [vmem:[%s3 + $0x1d8] sm:$0xff]
  %v1104 = vld [vmem:[%s3 + $0x1e0] sm:$0xff]
  %v1105 = vld [vmem:[%s3 + $0x1e8] sm:$0xff]
  %v1106 = vld [vmem:[%s3 + $0x1f0] sm:$0xff]
  %v1107 = vld [vmem:[%s3 + $0x1f8] sm:$0xff]
  %v1108 = vld [vmem:[%s3 + $0x200] sm:$0xff]
  %v1109 = vld [vmem:[%s3 + $0x208] sm:$0xff]
  %v1110 = vld [vmem:[%s3 + $0x210] sm:$0xff]
  %v1111 = vld [vmem:[%s3 + $0x218] sm:$0xff]
  %v1112 = vld [vmem:[%s3 + $0x220] sm:$0xff]
  %v1113 = vld [vmem:[%s3 + $0x228] sm:$0xff]
  %v1114 = vld [vmem:[%s3 + $0x230] sm:$0xff]
  %v1115 = vld [vmem:[%s3 + $0x238] sm:$0xff]
  %v1116 = vld [vmem:[%s3 + $0x240] sm:$0xff]
  %v1117 = vld [vmem:[%s3 + $0x248] sm:$0xff]
  %v1118 = vld [vmem:[%s3 + $0x250] sm:$0xff]
  %v1119 = vld [vmem:[%s3 + $0x258] sm:$0xff]
  %v1120 = vld [vmem:[%s3 + $0x260] sm:$0xff]
  %v1121 = vld [vmem:[%s3 + $0x268] sm:$0xff]
  %v1122 = vld [vmem:[%s3 + $0x270] sm:$0xff]
  %v1123 = vld [vmem:[%s3 + $0x278] sm:$0xff]
  %v1124 = vld [vmem:[%s3 + $0x280] sm:$0xff]
  %v1125 = vld [vmem:[%s3 + $0x288] sm:$0xff]
  %v1126 = vld [vmem:[%s3 + $0x290] sm:$0xff]
  %v1127 = vld [vmem:[%s3 + $0x298] sm:$0xff]
  %v1128 = vld [vmem:[%s3 + $0x2a0] sm:$0xff]
  %v1129 = vld [vmem:[%s3 + $0x2a8] sm:$0xff]
  %v1130 = vld [vmem:[%s3 + $0x2b0] sm:$0xff]
  %v1131 = vld [vmem:[%s3 + $0x2b8] sm:$0xff]
  %v1132 = vld [vmem:[%s3 + $0x2c0] sm:$0xff]
  %v1133 = vld [vmem:[%s3 + $0x2c8] sm:$0xff]
  %v1134 = vld [vmem:[%s3 + $0x2d0] sm:$0xff]
  %v1135 = vld [vmem:[%s3 + $0x2d8] sm:$0xff]
  %v1136 = vld [vmem:[%s3 + $0x2e0] sm:$0xff]
  %v1137 = vld [vmem:[%s3 + $0x2e8] sm:$0xff]
  %v1138 = vld [vmem:[%s3 + $0x2f0] sm:$0xff]
  %v1139 = vld [vmem:[%s3 + $0x2f8] sm:$0xff]
  %v1140 = vld [vmem:[%s3 + $0x300] sm:$0xff]
  %v1141 = vld [vmem:[%s3 + $0x308] sm:$0xff]
  %v1142 = vld [vmem:[%s3 + $0x310] sm:$0xff]
  %v1143 = vld [vmem:[%s3 + $0x318] sm:$0xff]
  %v1144 = vld [vmem:[%s3 + $0x320] sm:$0xff]
  %v1145 = vld [vmem:[%s3 + $0x328] sm:$0xff]
  %v1146 = vld [vmem:[%s3 + $0x330] sm:$0xff]
  %v1147 = vld [vmem:[%s3 + $0x338] sm:$0xff]
  %v1148 = vld [vmem:[%s3 + $0x340] sm:$0xff]
  %v1149 = vld [vmem:[%s3 + $0x348] sm:$0xff]
  %v1150 = vld [vmem:[%s3 + $0x350] sm:$0xff]
  %v1151 = vld [vmem:[%s3 + $0x358] sm:$0xff]
  %v1152 = vld [vmem:[%s3 + $0x360] sm:$0xff]
  %v1153 = vld [vmem:[%s3 + $0x368] sm:$0xff]
  %v1154 = vld [vmem:[%s3 + $0x370] sm:$0xff]
  %v1155 = vld [vmem:[%s3 + $0x378] sm:$0xff]
  %v1156 = vld [vmem:[%s3 + $0x380] sm:$0xff]
  %v1157 = vld [vmem:[%s3 + $0x388] sm:$0xff]
  %v1158 = vld [vmem:[%s3 + $0x390] sm:$0xff]
  %v1159 = vld [vmem:[%s3 + $0x398] sm:$0xff]
  %v1160 = vld [vmem:[%s3 + $0x3a0] sm:$0xff]
  %v1161 = vld [vmem:[%s3 + $0x3a8] sm:$0xff]
  %v1162 = vld [vmem:[%s3 + $0x3b0] sm:$0xff]
  %v1163 = vld [vmem:[%s3 + $0x3b8] sm:$0xff]
  %v1164 = vld [vmem:[%s3 + $0x3c0] sm:$0xff]
  %v1165 = vld [vmem:[%s3 + $0x3c8] sm:$0xff]
  %v1166 = vld [vmem:[%s3 + $0x3d0] sm:$0xff]
  %v1167 = vld [vmem:[%s3 + $0x3d8] sm:$0xff]
  %v1168 = vld [vmem:[%s3 + $0x3e0] sm:$0xff]
  %v1169 = vld [vmem:[%s3 + $0x3e8] sm:$0xff]
  %v1170 = vld [vmem:[%s3 + $0x3f0] sm:$0xff]
  %v1171 = vld [vmem:[%s3 + $0x3f8] sm:$0xff]
  %v1172 = vld [vmem:[%s3 + $0x400] sm:$0xff]
  %v1173 = vld [vmem:[%s3 + $0x408] sm:$0xff]
  %v1174 = vld [vmem:[%s3 + $0x410] sm:$0xff]
  %v1175 = vld [vmem:[%s3 + $0x418] sm:$0xff]
  %v1176 = vld [vmem:[%s3 + $0x420] sm:$0xff]
  %v1177 = vld [vmem:[%s3 + $0x428] sm:$0xff]
  %v1178 = vld [vmem:[%s3 + $0x430] sm:$0xff]
  %v1179 = vld [vmem:[%s3 + $0x438] sm:$0xff]
  %v1180 = vld [vmem:[%s3 + $0x440] sm:$0xff]
  %v1181 = vld [vmem:[%s3 + $0x448] sm:$0xff]
  %v1182 = vld [vmem:[%s3 + $0x450] sm:$0xff]
  %v1183 = vld [vmem:[%s3 + $0x458] sm:$0xff]
  %v1184 = vld [vmem:[%s3 + $0x460] sm:$0xff]
  %v1185 = vld [vmem:[%s3 + $0x468] sm:$0xff]
  %v1186 = vld [vmem:[%s3 + $0x470] sm:$0xff]
  %v1187 = vld [vmem:[%s3 + $0x478] sm:$0xff]
  %v1188 = vld [vmem:[%s3 + $0x480] sm:$0xff]
  %v1189 = vld [vmem:[%s3 + $0x488] sm:$0xff]
  %v1190 = vld [vmem:[%s3 + $0x490] sm:$0xff]
  %v1191 = vld [vmem:[%s3 + $0x498] sm:$0xff]
  %v1192 = vld [vmem:[%s3 + $0x4a0] sm:$0xff]
  %v1193 = vld [vmem:[%s3 + $0x4a8] sm:$0xff]
  %v1194 = vld [vmem:[%s3 + $0x4b0] sm:$0xff]
  %v1195 = vld [vmem:[%s3 + $0x4b8] sm:$0xff]
  %v1196 = vld [vmem:[%s3 + $0x4c0] sm:$0xff]
  %v1197 = vld [vmem:[%s3 + $0x4c8] sm:$0xff]
  %v1198 = vld [vmem:[%s3 + $0x4d0] sm:$0xff]
  %v1199 = vld [vmem:[%s3 + $0x4d8] sm:$0xff]
  %v1200 = vld [vmem:[%s3 + $0x4e0] sm:$0xff]
  %v1201 = vld [vmem:[%s3 + $0x4e8] sm:$0xff]
  %v1202 = vld [vmem:[%s3 + $0x4f0] sm:$0xff]
  %v1203 = vld [vmem:[%s3 + $0x4f8] sm:$0xff]
  %v1204 = vld [vmem:[%s3 + $0x500] sm:$0xff]
  %v1205 = vld [vmem:[%s3 + $0x508] sm:$0xff]
  %v1206 = vld [vmem:[%s3 + $0x510] sm:$0xff]
  %v1207 = vld [vmem:[%s3 + $0x518] sm:$0xff]
  %v1208 = vld [vmem:[%s3 + $0x520] sm:$0xff]
  %v1209 = vld [vmem:[%s3 + $0x528] sm:$0xff]
  %v1210 = vld [vmem:[%s3 + $0x530] sm:$0xff]
  %v1211 = vld [vmem:[%s3 + $0x538] sm:$0xff]
  %v1212 = vld [vmem:[%s3 + $0x540] sm:$0xff]
  %v1213 = vld [vmem:[%s3 + $0x548] sm:$0xff]
  %v1214 = vld [vmem:[%s3 + $0x550] sm:$0xff]
  %v1215 = vld [vmem:[%s3 + $0x558] sm:$0xff]
  %v1216 = vld [vmem:[%s3 + $0x560] sm:$0xff]
  %v1217 = vld [vmem:[%s3 + $0x568] sm:$0xff]
  %v1218 = vld [vmem:[%s3 + $0x570] sm:$0xff]
  %v1219 = vld [vmem:[%s3 + $0x578] sm:$0xff]
  %v1220 = vld [vmem:[%s3 + $0x580] sm:$0xff]
  %v1221 = vld [vmem:[%s3 + $0x588] sm:$0xff]
  %v1222 = vld [vmem:[%s3 + $0x590] sm:$0xff]
  %v1223 = vld [vmem:[%s3 + $0x598] sm:$0xff]
  %v1224 = vld [vmem:[%s3 + $0x5a0] sm:$0xff]
  %v1225 = vld [vmem:[%s3 + $0x5a8] sm:$0xff]
  %v1226 = vld [vmem:[%s3 + $0x5b0] sm:$0xff]
  %v1227 = vld [vmem:[%s3 + $0x5b8] sm:$0xff]
  %v1228 = vld [vmem:[%s3 + $0x5c0] sm:$0xff]
  %v1229 = vld [vmem:[%s3 + $0x5c8] sm:$0xff]
  %v1230 = vld [vmem:[%s3 + $0x5d0] sm:$0xff]
  %v1231 = vld [vmem:[%s3 + $0x5d8] sm:$0xff]
  %v1232 = vld [vmem:[%s3 + $0x5e0] sm:$0xff]
  %v1233 = vld [vmem:[%s3 + $0x5e8] sm:$0xff]
  %v1234 = vld [vmem:[%s3 + $0x5f0] sm:$0xff]
  %v1235 = vld [vmem:[%s3 + $0x5f8] sm:$0xff]
  %v1236 = vld [vmem:[%s3 + $0x600] sm:$0xff]
  %v1237 = vld [vmem:[%s3 + $0x608] sm:$0xff]
  %v1238 = vld [vmem:[%s3 + $0x610] sm:$0xff]
  %v1239 = vld [vmem:[%s3 + $0x618] sm:$0xff]
  %v1240 = vld [vmem:[%s3 + $0x620] sm:$0xff]
  %v1241 = vld [vmem:[%s3 + $0x628] sm:$0xff]
  %v1242 = vld [vmem:[%s3 + $0x630] sm:$0xff]
  %v1243 = vld [vmem:[%s3 + $0x638] sm:$0xff]
  %v1244 = vld [vmem:[%s3 + $0x640] sm:$0xff]
  %v1245 = vld [vmem:[%s3 + $0x648] sm:$0xff]
  %v1246 = vld [vmem:[%s3 + $0x650] sm:$0xff]
  %v1247 = vld [vmem:[%s3 + $0x658] sm:$0xff]
  %v1248 = vld [vmem:[%s3 + $0x660] sm:$0xff]
  %v1249 = vld [vmem:[%s3 + $0x668] sm:$0xff]
  %v1250 = vld [vmem:[%s3 + $0x670] sm:$0xff]
  %v1251 = vld [vmem:[%s3 + $0x678] sm:$0xff]
  %v1252 = vld [vmem:[%s3 + $0x680] sm:$0xff]
  %v1253 = vld [vmem:[%s3 + $0x688] sm:$0xff]
  %v1254 = vld [vmem:[%s3 + $0x690] sm:$0xff]
  %v1255 = vld [vmem:[%s3 + $0x698] sm:$0xff]
  %v1256 = vld [vmem:[%s3 + $0x6a0] sm:$0xff]
  %v1257 = vld [vmem:[%s3 + $0x6a8] sm:$0xff]
  %v1258 = vld [vmem:[%s3 + $0x6b0] sm:$0xff]
  %v1259 = vld [vmem:[%s3 + $0x6b8] sm:$0xff]
  %v1260 = vld [vmem:[%s3 + $0x6c0] sm:$0xff]
  %v1261 = vld [vmem:[%s3 + $0x6c8] sm:$0xff]
  %v1262 = vld [vmem:[%s3 + $0x6d0] sm:$0xff]
  %v1263 = vld [vmem:[%s3 + $0x6d8] sm:$0xff]
  %v1264 = vld [vmem:[%s3 + $0x6e0] sm:$0xff]
  %v1265 = vld [vmem:[%s3 + $0x6e8] sm:$0xff]
  %v1266 = vld [vmem:[%s3 + $0x6f0] sm:$0xff]
  %v1267 = vld [vmem:[%s3 + $0x6f8] sm:$0xff]
  %v1268 = vld [vmem:[%s3 + $0x700] sm:$0xff]
  %v1269 = vld [vmem:[%s3 + $0x708] sm:$0xff]
  %v1270 = vld [vmem:[%s3 + $0x710] sm:$0xff]
  %v1271 = vld [vmem:[%s3 + $0x718] sm:$0xff]
  %v1272 = vld [vmem:[%s3 + $0x720] sm:$0xff]
  %v1273 = vld [vmem:[%s3 + $0x728] sm:$0xff]
  %v1274 = vld [vmem:[%s3 + $0x730] sm:$0xff]
  %v1275 = vld [vmem:[%s3 + $0x738] sm:$0xff]
  %v1276 = vld [vmem:[%s3 + $0x740] sm:$0xff]
  %v1277 = vld [vmem:[%s3 + $0x748] sm:$0xff]
  %v1278 = vld [vmem:[%s3 + $0x750] sm:$0xff]
  %v1279 = vld [vmem:[%s3 + $0x758] sm:$0xff]
  %v1280 = vld [vmem:[%s3 + $0x760] sm:$0xff]
  %v1281 = vld [vmem:[%s3 + $0x768] sm:$0xff]
  %v1282 = vld [vmem:[%s3 + $0x770] sm:$0xff]
  %v1283 = vld [vmem:[%s3 + $0x778] sm:$0xff]
  %v1284 = vld [vmem:[%s3 + $0x780] sm:$0xff]
  %v1285 = vld [vmem:[%s3 + $0x788] sm:$0xff]
  %v1286 = vld [vmem:[%s3 + $0x790] sm:$0xff]
  %v1287 = vld [vmem:[%s3 + $0x798] sm:$0xff]
  %v1288 = vld [vmem:[%s3 + $0x7a0] sm:$0xff]
  %v1289 = vld [vmem:[%s3 + $0x7a8] sm:$0xff]
  %v1290 = vld [vmem:[%s3 + $0x7b0] sm:$0xff]
  %v1291 = vld [vmem:[%s3 + $0x7b8] sm:$0xff]
  %v1292 = vld [vmem:[%s3 + $0x7c0] sm:$0xff]
  %v1293 = vld [vmem:[%s3 + $0x7c8] sm:$0xff]
  %v1294 = vld [vmem:[%s3 + $0x7d0] sm:$0xff]
  %v1295 = vld [vmem:[%s3 + $0x7d8] sm:$0xff]
  %v1296 = vld [vmem:[%s3 + $0x7e0] sm:$0xff]
  %v1297 = vld [vmem:[%s3 + $0x7e8] sm:$0xff]
  %v1298 = vld [vmem:[%s3 + $0x7f0] sm:$0xff]
  %v1299 = vld [vmem:[%s3 + $0x7f8] sm:$0xff]
  %v1300 = vld [vmem:[%s4] sm:$0xf]
  %v1302 = vlaneseq
  %v1303 = vshrl.u32 %v1302, 7
  %v1304 = vsub.s32 0, %v1303
  %v1305 = vrot.slane %v1300, %v1304
  %v1306 = vlaneseq
  %v1307 = vshrl.u32 %v1306, 7
  %v1308 = vsub.s32 1, %v1307
  %v1309 = vrot.slane %v1300, %v1308
  %v1310 = vlaneseq
  %v1311 = vshrl.u32 %v1310, 7
  %v1312 = vsub.s32 2, %v1311
  %v1313 = vrot.slane %v1300, %v1312
  %v1314 = vlaneseq
  %v1315 = vshrl.u32 %v1314, 7
  %v1316 = vsub.s32 3, %v1315
  %v1317 = vrot.slane %v1300, %v1316
  %v1578 = vunpack.c.l.b16 %v1044
  %v1579 = vunpack.c.h.b16 %v1044
  %v1580 = vunpack.c.l.b16 %v1045
  %v1581 = vunpack.c.h.b16 %v1045
  %v1582 = vunpack.c.l.b16 %v1046
  %v1583 = vunpack.c.h.b16 %v1046
  %v1584 = vunpack.c.l.b16 %v1047
  %v1585 = vunpack.c.h.b16 %v1047
  %v1586 = vunpack.c.l.b16 %v1048
  %v1587 = vunpack.c.h.b16 %v1048
  %v1588 = vunpack.c.l.b16 %v1049
  %v1589 = vunpack.c.h.b16 %v1049
  %v1590 = vunpack.c.l.b16 %v1050
  %v1591 = vunpack.c.h.b16 %v1050
  %v1592 = vunpack.c.l.b16 %v1051
  %v1593 = vunpack.c.h.b16 %v1051
  %v1594 = vunpack.c.l.b16 %v1052
  %v1595 = vunpack.c.h.b16 %v1052
  %v1596 = vunpack.c.l.b16 %v1053
  %v1597 = vunpack.c.h.b16 %v1053
  %v1598 = vunpack.c.l.b16 %v1054
  %v1599 = vunpack.c.h.b16 %v1054
  %v1600 = vunpack.c.l.b16 %v1055
  %v1601 = vunpack.c.h.b16 %v1055
  %v1602 = vunpack.c.l.b16 %v1056
  %v1603 = vunpack.c.h.b16 %v1056
  %v1604 = vunpack.c.l.b16 %v1057
  %v1605 = vunpack.c.h.b16 %v1057
  %v1606 = vunpack.c.l.b16 %v1058
  %v1607 = vunpack.c.h.b16 %v1058
  %v1608 = vunpack.c.l.b16 %v1059
  %v1609 = vunpack.c.h.b16 %v1059
  %v1610 = vunpack.c.l.b16 %v1060
  %v1611 = vunpack.c.h.b16 %v1060
  %v1612 = vunpack.c.l.b16 %v1061
  %v1613 = vunpack.c.h.b16 %v1061
  %v1614 = vunpack.c.l.b16 %v1062
  %v1615 = vunpack.c.h.b16 %v1062
  %v1616 = vunpack.c.l.b16 %v1063
  %v1617 = vunpack.c.h.b16 %v1063
  %v1618 = vunpack.c.l.b16 %v1064
  %v1619 = vunpack.c.h.b16 %v1064
  %v1620 = vunpack.c.l.b16 %v1065
  %v1621 = vunpack.c.h.b16 %v1065
  %v1622 = vunpack.c.l.b16 %v1066
  %v1623 = vunpack.c.h.b16 %v1066
  %v1624 = vunpack.c.l.b16 %v1067
  %v1625 = vunpack.c.h.b16 %v1067
  %v1626 = vunpack.c.l.b16 %v1068
  %v1627 = vunpack.c.h.b16 %v1068
  %v1628 = vunpack.c.l.b16 %v1069
  %v1629 = vunpack.c.h.b16 %v1069
  %v1630 = vunpack.c.l.b16 %v1070
  %v1631 = vunpack.c.h.b16 %v1070
  %v1632 = vunpack.c.l.b16 %v1071
  %v1633 = vunpack.c.h.b16 %v1071
  %v1634 = vunpack.c.l.b16 %v1072
  %v1635 = vunpack.c.h.b16 %v1072
  %v1636 = vunpack.c.l.b16 %v1073
  %v1637 = vunpack.c.h.b16 %v1073
  %v1638 = vunpack.c.l.b16 %v1074
  %v1639 = vunpack.c.h.b16 %v1074
  %v1640 = vunpack.c.l.b16 %v1075
  %v1641 = vunpack.c.h.b16 %v1075
  %v1642 = vunpack.c.l.b16 %v1076
  %v1643 = vunpack.c.h.b16 %v1076
  %v1644 = vunpack.c.l.b16 %v1077
  %v1645 = vunpack.c.h.b16 %v1077
  %v1646 = vunpack.c.l.b16 %v1078
  %v1647 = vunpack.c.h.b16 %v1078
  %v1648 = vunpack.c.l.b16 %v1079
  %v1649 = vunpack.c.h.b16 %v1079
  %v1650 = vunpack.c.l.b16 %v1080
  %v1651 = vunpack.c.h.b16 %v1080
  %v1652 = vunpack.c.l.b16 %v1081
  %v1653 = vunpack.c.h.b16 %v1081
  %v1654 = vunpack.c.l.b16 %v1082
  %v1655 = vunpack.c.h.b16 %v1082
  %v1656 = vunpack.c.l.b16 %v1083
  %v1657 = vunpack.c.h.b16 %v1083
  %v1658 = vunpack.c.l.b16 %v1084
  %v1659 = vunpack.c.h.b16 %v1084
  %v1660 = vunpack.c.l.b16 %v1085
  %v1661 = vunpack.c.h.b16 %v1085
  %v1662 = vunpack.c.l.b16 %v1086
  %v1663 = vunpack.c.h.b16 %v1086
  %v1664 = vunpack.c.l.b16 %v1087
  %v1665 = vunpack.c.h.b16 %v1087
  %v1666 = vunpack.c.l.b16 %v1088
  %v1667 = vunpack.c.h.b16 %v1088
  %v1668 = vunpack.c.l.b16 %v1089
  %v1669 = vunpack.c.h.b16 %v1089
  %v1670 = vunpack.c.l.b16 %v1090
  %v1671 = vunpack.c.h.b16 %v1090
  %v1672 = vunpack.c.l.b16 %v1091
  %v1673 = vunpack.c.h.b16 %v1091
  %v1674 = vunpack.c.l.b16 %v1092
  %v1675 = vunpack.c.h.b16 %v1092
  %v1676 = vunpack.c.l.b16 %v1093
  %v1677 = vunpack.c.h.b16 %v1093
  %v1678 = vunpack.c.l.b16 %v1094
  %v1679 = vunpack.c.h.b16 %v1094
  %v1680 = vunpack.c.l.b16 %v1095
  %v1681 = vunpack.c.h.b16 %v1095
  %v1682 = vunpack.c.l.b16 %v1096
  %v1683 = vunpack.c.h.b16 %v1096
  %v1684 = vunpack.c.l.b16 %v1097
  %v1685 = vunpack.c.h.b16 %v1097
  %v1686 = vunpack.c.l.b16 %v1098
  %v1687 = vunpack.c.h.b16 %v1098
  %v1688 = vunpack.c.l.b16 %v1099
  %v1689 = vunpack.c.h.b16 %v1099
  %v1690 = vunpack.c.l.b16 %v1100
  %v1691 = vunpack.c.h.b16 %v1100
  %v1692 = vunpack.c.l.b16 %v1101
  %v1693 = vunpack.c.h.b16 %v1101
  %v1694 = vunpack.c.l.b16 %v1102
  %v1695 = vunpack.c.h.b16 %v1102
  %v1696 = vunpack.c.l.b16 %v1103
  %v1697 = vunpack.c.h.b16 %v1103
  %v1698 = vunpack.c.l.b16 %v1104
  %v1699 = vunpack.c.h.b16 %v1104
  %v1700 = vunpack.c.l.b16 %v1105
  %v1701 = vunpack.c.h.b16 %v1105
  %v1702 = vunpack.c.l.b16 %v1106
  %v1703 = vunpack.c.h.b16 %v1106
  %v1704 = vunpack.c.l.b16 %v1107
  %v1705 = vunpack.c.h.b16 %v1107
  %v1706 = vunpack.c.l.b16 %v1108
  %v1707 = vunpack.c.h.b16 %v1108
  %v1708 = vunpack.c.l.b16 %v1109
  %v1709 = vunpack.c.h.b16 %v1109
  %v1710 = vunpack.c.l.b16 %v1110
  %v1711 = vunpack.c.h.b16 %v1110
  %v1712 = vunpack.c.l.b16 %v1111
  %v1713 = vunpack.c.h.b16 %v1111
  %v1714 = vunpack.c.l.b16 %v1112
  %v1715 = vunpack.c.h.b16 %v1112
  %v1716 = vunpack.c.l.b16 %v1113
  %v1717 = vunpack.c.h.b16 %v1113
  %v1718 = vunpack.c.l.b16 %v1114
  %v1719 = vunpack.c.h.b16 %v1114
  %v1720 = vunpack.c.l.b16 %v1115
  %v1721 = vunpack.c.h.b16 %v1115
  %v1722 = vunpack.c.l.b16 %v1116
  %v1723 = vunpack.c.h.b16 %v1116
  %v1724 = vunpack.c.l.b16 %v1117
  %v1725 = vunpack.c.h.b16 %v1117
  %v1726 = vunpack.c.l.b16 %v1118
  %v1727 = vunpack.c.h.b16 %v1118
  %v1728 = vunpack.c.l.b16 %v1119
  %v1729 = vunpack.c.h.b16 %v1119
  %v1730 = vunpack.c.l.b16 %v1120
  %v1731 = vunpack.c.h.b16 %v1120
  %v1732 = vunpack.c.l.b16 %v1121
  %v1733 = vunpack.c.h.b16 %v1121
  %v1734 = vunpack.c.l.b16 %v1122
  %v1735 = vunpack.c.h.b16 %v1122
  %v1736 = vunpack.c.l.b16 %v1123
  %v1737 = vunpack.c.h.b16 %v1123
  %v1738 = vunpack.c.l.b16 %v1124
  %v1739 = vunpack.c.h.b16 %v1124
  %v1740 = vunpack.c.l.b16 %v1125
  %v1741 = vunpack.c.h.b16 %v1125
  %v1742 = vunpack.c.l.b16 %v1126
  %v1743 = vunpack.c.h.b16 %v1126
  %v1744 = vunpack.c.l.b16 %v1127
  %v1745 = vunpack.c.h.b16 %v1127
  %v1746 = vunpack.c.l.b16 %v1128
  %v1747 = vunpack.c.h.b16 %v1128
  %v1748 = vunpack.c.l.b16 %v1129
  %v1749 = vunpack.c.h.b16 %v1129
  %v1750 = vunpack.c.l.b16 %v1130
  %v1751 = vunpack.c.h.b16 %v1130
  %v1752 = vunpack.c.l.b16 %v1131
  %v1753 = vunpack.c.h.b16 %v1131
  %v1754 = vunpack.c.l.b16 %v1132
  %v1755 = vunpack.c.h.b16 %v1132
  %v1756 = vunpack.c.l.b16 %v1133
  %v1757 = vunpack.c.h.b16 %v1133
  %v1758 = vunpack.c.l.b16 %v1134
  %v1759 = vunpack.c.h.b16 %v1134
  %v1760 = vunpack.c.l.b16 %v1135
  %v1761 = vunpack.c.h.b16 %v1135
  %v1762 = vunpack.c.l.b16 %v1136
  %v1763 = vunpack.c.h.b16 %v1136
  %v1764 = vunpack.c.l.b16 %v1137
  %v1765 = vunpack.c.h.b16 %v1137
  %v1766 = vunpack.c.l.b16 %v1138
  %v1767 = vunpack.c.h.b16 %v1138
  %v1768 = vunpack.c.l.b16 %v1139
  %v1769 = vunpack.c.h.b16 %v1139
  %v1770 = vunpack.c.l.b16 %v1140
  %v1771 = vunpack.c.h.b16 %v1140
  %v1772 = vunpack.c.l.b16 %v1141
  %v1773 = vunpack.c.h.b16 %v1141
  %v1774 = vunpack.c.l.b16 %v1142
  %v1775 = vunpack.c.h.b16 %v1142
  %v1776 = vunpack.c.l.b16 %v1143
  %v1777 = vunpack.c.h.b16 %v1143
  %v1778 = vunpack.c.l.b16 %v1144
  %v1779 = vunpack.c.h.b16 %v1144
  %v1780 = vunpack.c.l.b16 %v1145
  %v1781 = vunpack.c.h.b16 %v1145
  %v1782 = vunpack.c.l.b16 %v1146
  %v1783 = vunpack.c.h.b16 %v1146
  %v1784 = vunpack.c.l.b16 %v1147
  %v1785 = vunpack.c.h.b16 %v1147
  %v1786 = vunpack.c.l.b16 %v1148
  %v1787 = vunpack.c.h.b16 %v1148
  %v1788 = vunpack.c.l.b16 %v1149
  %v1789 = vunpack.c.h.b16 %v1149
  %v1790 = vunpack.c.l.b16 %v1150
  %v1791 = vunpack.c.h.b16 %v1150
  %v1792 = vunpack.c.l.b16 %v1151
  %v1793 = vunpack.c.h.b16 %v1151
  %v1794 = vunpack.c.l.b16 %v1152
  %v1795 = vunpack.c.h.b16 %v1152
  %v1796 = vunpack.c.l.b16 %v1153
  %v1797 = vunpack.c.h.b16 %v1153
  %v1798 = vunpack.c.l.b16 %v1154
  %v1799 = vunpack.c.h.b16 %v1154
  %v1800 = vunpack.c.l.b16 %v1155
  %v1801 = vunpack.c.h.b16 %v1155
  %v1802 = vunpack.c.l.b16 %v1156
  %v1803 = vunpack.c.h.b16 %v1156
  %v1804 = vunpack.c.l.b16 %v1157
  %v1805 = vunpack.c.h.b16 %v1157
  %v1806 = vunpack.c.l.b16 %v1158
  %v1807 = vunpack.c.h.b16 %v1158
  %v1808 = vunpack.c.l.b16 %v1159
  %v1809 = vunpack.c.h.b16 %v1159
  %v1810 = vunpack.c.l.b16 %v1160
  %v1811 = vunpack.c.h.b16 %v1160
  %v1812 = vunpack.c.l.b16 %v1161
  %v1813 = vunpack.c.h.b16 %v1161
  %v1814 = vunpack.c.l.b16 %v1162
  %v1815 = vunpack.c.h.b16 %v1162
  %v1816 = vunpack.c.l.b16 %v1163
  %v1817 = vunpack.c.h.b16 %v1163
  %v1818 = vunpack.c.l.b16 %v1164
  %v1819 = vunpack.c.h.b16 %v1164
  %v1820 = vunpack.c.l.b16 %v1165
  %v1821 = vunpack.c.h.b16 %v1165
  %v1822 = vunpack.c.l.b16 %v1166
  %v1823 = vunpack.c.h.b16 %v1166
  %v1824 = vunpack.c.l.b16 %v1167
  %v1825 = vunpack.c.h.b16 %v1167
  %v1826 = vunpack.c.l.b16 %v1168
  %v1827 = vunpack.c.h.b16 %v1168
  %v1828 = vunpack.c.l.b16 %v1169
  %v1829 = vunpack.c.h.b16 %v1169
  %v1830 = vunpack.c.l.b16 %v1170
  %v1831 = vunpack.c.h.b16 %v1170
  %v1832 = vunpack.c.l.b16 %v1171
  %v1833 = vunpack.c.h.b16 %v1171
  %v1834 = vunpack.c.l.b16 %v1172
  %v1835 = vunpack.c.h.b16 %v1172
  %v1836 = vunpack.c.l.b16 %v1173
  %v1837 = vunpack.c.h.b16 %v1173
  %v1838 = vunpack.c.l.b16 %v1174
  %v1839 = vunpack.c.h.b16 %v1174
  %v1840 = vunpack.c.l.b16 %v1175
  %v1841 = vunpack.c.h.b16 %v1175
  %v1842 = vunpack.c.l.b16 %v1176
  %v1843 = vunpack.c.h.b16 %v1176
  %v1844 = vunpack.c.l.b16 %v1177
  %v1845 = vunpack.c.h.b16 %v1177
  %v1846 = vunpack.c.l.b16 %v1178
  %v1847 = vunpack.c.h.b16 %v1178
  %v1848 = vunpack.c.l.b16 %v1179
  %v1849 = vunpack.c.h.b16 %v1179
  %v1850 = vunpack.c.l.b16 %v1180
  %v1851 = vunpack.c.h.b16 %v1180
  %v1852 = vunpack.c.l.b16 %v1181
  %v1853 = vunpack.c.h.b16 %v1181
  %v1854 = vunpack.c.l.b16 %v1182
  %v1855 = vunpack.c.h.b16 %v1182
  %v1856 = vunpack.c.l.b16 %v1183
  %v1857 = vunpack.c.h.b16 %v1183
  %v1858 = vunpack.c.l.b16 %v1184
  %v1859 = vunpack.c.h.b16 %v1184
  %v1860 = vunpack.c.l.b16 %v1185
  %v1861 = vunpack.c.h.b16 %v1185
  %v1862 = vunpack.c.l.b16 %v1186
  %v1863 = vunpack.c.h.b16 %v1186
  %v1864 = vunpack.c.l.b16 %v1187
  %v1865 = vunpack.c.h.b16 %v1187
  %v1866 = vunpack.c.l.b16 %v1188
  %v1867 = vunpack.c.h.b16 %v1188
  %v1868 = vunpack.c.l.b16 %v1189
  %v1869 = vunpack.c.h.b16 %v1189
  %v1870 = vunpack.c.l.b16 %v1190
  %v1871 = vunpack.c.h.b16 %v1190
  %v1872 = vunpack.c.l.b16 %v1191
  %v1873 = vunpack.c.h.b16 %v1191
  %v1874 = vunpack.c.l.b16 %v1192
  %v1875 = vunpack.c.h.b16 %v1192
  %v1876 = vunpack.c.l.b16 %v1193
  %v1877 = vunpack.c.h.b16 %v1193
  %v1878 = vunpack.c.l.b16 %v1194
  %v1879 = vunpack.c.h.b16 %v1194
  %v1880 = vunpack.c.l.b16 %v1195
  %v1881 = vunpack.c.h.b16 %v1195
  %v1882 = vunpack.c.l.b16 %v1196
  %v1883 = vunpack.c.h.b16 %v1196
  %v1884 = vunpack.c.l.b16 %v1197
  %v1885 = vunpack.c.h.b16 %v1197
  %v1886 = vunpack.c.l.b16 %v1198
  %v1887 = vunpack.c.h.b16 %v1198
  %v1888 = vunpack.c.l.b16 %v1199
  %v1889 = vunpack.c.h.b16 %v1199
  %v1890 = vunpack.c.l.b16 %v1200
  %v1891 = vunpack.c.h.b16 %v1200
  %v1892 = vunpack.c.l.b16 %v1201
  %v1893 = vunpack.c.h.b16 %v1201
  %v1894 = vunpack.c.l.b16 %v1202
  %v1895 = vunpack.c.h.b16 %v1202
  %v1896 = vunpack.c.l.b16 %v1203
  %v1897 = vunpack.c.h.b16 %v1203
  %v1898 = vunpack.c.l.b16 %v1204
  %v1899 = vunpack.c.h.b16 %v1204
  %v1900 = vunpack.c.l.b16 %v1205
  %v1901 = vunpack.c.h.b16 %v1205
  %v1902 = vunpack.c.l.b16 %v1206
  %v1903 = vunpack.c.h.b16 %v1206
  %v1904 = vunpack.c.l.b16 %v1207
  %v1905 = vunpack.c.h.b16 %v1207
  %v1906 = vunpack.c.l.b16 %v1208
  %v1907 = vunpack.c.h.b16 %v1208
  %v1908 = vunpack.c.l.b16 %v1209
  %v1909 = vunpack.c.h.b16 %v1209
  %v1910 = vunpack.c.l.b16 %v1210
  %v1911 = vunpack.c.h.b16 %v1210
  %v1912 = vunpack.c.l.b16 %v1211
  %v1913 = vunpack.c.h.b16 %v1211
  %v1914 = vunpack.c.l.b16 %v1212
  %v1915 = vunpack.c.h.b16 %v1212
  %v1916 = vunpack.c.l.b16 %v1213
  %v1917 = vunpack.c.h.b16 %v1213
  %v1918 = vunpack.c.l.b16 %v1214
  %v1919 = vunpack.c.h.b16 %v1214
  %v1920 = vunpack.c.l.b16 %v1215
  %v1921 = vunpack.c.h.b16 %v1215
  %v1922 = vunpack.c.l.b16 %v1216
  %v1923 = vunpack.c.h.b16 %v1216
  %v1924 = vunpack.c.l.b16 %v1217
  %v1925 = vunpack.c.h.b16 %v1217
  %v1926 = vunpack.c.l.b16 %v1218
  %v1927 = vunpack.c.h.b16 %v1218
  %v1928 = vunpack.c.l.b16 %v1219
  %v1929 = vunpack.c.h.b16 %v1219
  %v1930 = vunpack.c.l.b16 %v1220
  %v1931 = vunpack.c.h.b16 %v1220
  %v1932 = vunpack.c.l.b16 %v1221
  %v1933 = vunpack.c.h.b16 %v1221
  %v1934 = vunpack.c.l.b16 %v1222
  %v1935 = vunpack.c.h.b16 %v1222
  %v1936 = vunpack.c.l.b16 %v1223
  %v1937 = vunpack.c.h.b16 %v1223
  %v1938 = vunpack.c.l.b16 %v1224
  %v1939 = vunpack.c.h.b16 %v1224
  %v1940 = vunpack.c.l.b16 %v1225
  %v1941 = vunpack.c.h.b16 %v1225
  %v1942 = vunpack.c.l.b16 %v1226
  %v1943 = vunpack.c.h.b16 %v1226
  %v1944 = vunpack.c.l.b16 %v1227
  %v1945 = vunpack.c.h.b16 %v1227
  %v1946 = vunpack.c.l.b16 %v1228
  %v1947 = vunpack.c.h.b16 %v1228
  %v1948 = vunpack.c.l.b16 %v1229
  %v1949 = vunpack.c.h.b16 %v1229
  %v1950 = vunpack.c.l.b16 %v1230
  %v1951 = vunpack.c.h.b16 %v1230
  %v1952 = vunpack.c.l.b16 %v1231
  %v1953 = vunpack.c.h.b16 %v1231
  %v1954 = vunpack.c.l.b16 %v1232
  %v1955 = vunpack.c.h.b16 %v1232
  %v1956 = vunpack.c.l.b16 %v1233
  %v1957 = vunpack.c.h.b16 %v1233
  %v1958 = vunpack.c.l.b16 %v1234
  %v1959 = vunpack.c.h.b16 %v1234
  %v1960 = vunpack.c.l.b16 %v1235
  %v1961 = vunpack.c.h.b16 %v1235
  %v1962 = vunpack.c.l.b16 %v1236
  %v1963 = vunpack.c.h.b16 %v1236
  %v1964 = vunpack.c.l.b16 %v1237
  %v1965 = vunpack.c.h.b16 %v1237
  %v1966 = vunpack.c.l.b16 %v1238
  %v1967 = vunpack.c.h.b16 %v1238
  %v1968 = vunpack.c.l.b16 %v1239
  %v1969 = vunpack.c.h.b16 %v1239
  %v1970 = vunpack.c.l.b16 %v1240
  %v1971 = vunpack.c.h.b16 %v1240
  %v1972 = vunpack.c.l.b16 %v1241
  %v1973 = vunpack.c.h.b16 %v1241
  %v1974 = vunpack.c.l.b16 %v1242
  %v1975 = vunpack.c.h.b16 %v1242
  %v1976 = vunpack.c.l.b16 %v1243
  %v1977 = vunpack.c.h.b16 %v1243
  %v1978 = vunpack.c.l.b16 %v1244
  %v1979 = vunpack.c.h.b16 %v1244
  %v1980 = vunpack.c.l.b16 %v1245
  %v1981 = vunpack.c.h.b16 %v1245
  %v1982 = vunpack.c.l.b16 %v1246
  %v1983 = vunpack.c.h.b16 %v1246
  %v1984 = vunpack.c.l.b16 %v1247
  %v1985 = vunpack.c.h.b16 %v1247
  %v1986 = vunpack.c.l.b16 %v1248
  %v1987 = vunpack.c.h.b16 %v1248
  %v1988 = vunpack.c.l.b16 %v1249
  %v1989 = vunpack.c.h.b16 %v1249
  %v1990 = vunpack.c.l.b16 %v1250
  %v1991 = vunpack.c.h.b16 %v1250
  %v1992 = vunpack.c.l.b16 %v1251
  %v1993 = vunpack.c.h.b16 %v1251
  %v1994 = vunpack.c.l.b16 %v1252
  %v1995 = vunpack.c.h.b16 %v1252
  %v1996 = vunpack.c.l.b16 %v1253
  %v1997 = vunpack.c.h.b16 %v1253
  %v1998 = vunpack.c.l.b16 %v1254
  %v1999 = vunpack.c.h.b16 %v1254
  %v2000 = vunpack.c.l.b16 %v1255
  %v2001 = vunpack.c.h.b16 %v1255
  %v2002 = vunpack.c.l.b16 %v1256
  %v2003 = vunpack.c.h.b16 %v1256
  %v2004 = vunpack.c.l.b16 %v1257
  %v2005 = vunpack.c.h.b16 %v1257
  %v2006 = vunpack.c.l.b16 %v1258
  %v2007 = vunpack.c.h.b16 %v1258
  %v2008 = vunpack.c.l.b16 %v1259
  %v2009 = vunpack.c.h.b16 %v1259
  %v2010 = vunpack.c.l.b16 %v1260
  %v2011 = vunpack.c.h.b16 %v1260
  %v2012 = vunpack.c.l.b16 %v1261
  %v2013 = vunpack.c.h.b16 %v1261
  %v2014 = vunpack.c.l.b16 %v1262
  %v2015 = vunpack.c.h.b16 %v1262
  %v2016 = vunpack.c.l.b16 %v1263
  %v2017 = vunpack.c.h.b16 %v1263
  %v2018 = vunpack.c.l.b16 %v1264
  %v2019 = vunpack.c.h.b16 %v1264
  %v2020 = vunpack.c.l.b16 %v1265
  %v2021 = vunpack.c.h.b16 %v1265
  %v2022 = vunpack.c.l.b16 %v1266
  %v2023 = vunpack.c.h.b16 %v1266
  %v2024 = vunpack.c.l.b16 %v1267
  %v2025 = vunpack.c.h.b16 %v1267
  %v2026 = vunpack.c.l.b16 %v1268
  %v2027 = vunpack.c.h.b16 %v1268
  %v2028 = vunpack.c.l.b16 %v1269
  %v2029 = vunpack.c.h.b16 %v1269
  %v2030 = vunpack.c.l.b16 %v1270
  %v2031 = vunpack.c.h.b16 %v1270
  %v2032 = vunpack.c.l.b16 %v1271
  %v2033 = vunpack.c.h.b16 %v1271
  %v2034 = vunpack.c.l.b16 %v1272
  %v2035 = vunpack.c.h.b16 %v1272
  %v2036 = vunpack.c.l.b16 %v1273
  %v2037 = vunpack.c.h.b16 %v1273
  %v2038 = vunpack.c.l.b16 %v1274
  %v2039 = vunpack.c.h.b16 %v1274
  %v2040 = vunpack.c.l.b16 %v1275
  %v2041 = vunpack.c.h.b16 %v1275
  %v2042 = vunpack.c.l.b16 %v1276
  %v2043 = vunpack.c.h.b16 %v1276
  %v2044 = vunpack.c.l.b16 %v1277
  %v2045 = vunpack.c.h.b16 %v1277
  %v2046 = vunpack.c.l.b16 %v1278
  %v2047 = vunpack.c.h.b16 %v1278
  %v2048 = vunpack.c.l.b16 %v1279
  %v2049 = vunpack.c.h.b16 %v1279
  %v2050 = vunpack.c.l.b16 %v1280
  %v2051 = vunpack.c.h.b16 %v1280
  %v2052 = vunpack.c.l.b16 %v1281
  %v2053 = vunpack.c.h.b16 %v1281
  %v2054 = vunpack.c.l.b16 %v1282
  %v2055 = vunpack.c.h.b16 %v1282
  %v2056 = vunpack.c.l.b16 %v1283
  %v2057 = vunpack.c.h.b16 %v1283
  %v2058 = vunpack.c.l.b16 %v1284
  %v2059 = vunpack.c.h.b16 %v1284
  %v2060 = vunpack.c.l.b16 %v1285
  %v2061 = vunpack.c.h.b16 %v1285
  %v2062 = vunpack.c.l.b16 %v1286
  %v2063 = vunpack.c.h.b16 %v1286
  %v2064 = vunpack.c.l.b16 %v1287
  %v2065 = vunpack.c.h.b16 %v1287
  %v2066 = vunpack.c.l.b16 %v1288
  %v2067 = vunpack.c.h.b16 %v1288
  %v2068 = vunpack.c.l.b16 %v1289
  %v2069 = vunpack.c.h.b16 %v1289
  %v2070 = vunpack.c.l.b16 %v1290
  %v2071 = vunpack.c.h.b16 %v1290
  %v2072 = vunpack.c.l.b16 %v1291
  %v2073 = vunpack.c.h.b16 %v1291
  %v2074 = vunpack.c.l.b16 %v1292
  %v2075 = vunpack.c.h.b16 %v1292
  %v2076 = vunpack.c.l.b16 %v1293
  %v2077 = vunpack.c.h.b16 %v1293
  %v2078 = vunpack.c.l.b16 %v1294
  %v2079 = vunpack.c.h.b16 %v1294
  %v2080 = vunpack.c.l.b16 %v1295
  %v2081 = vunpack.c.h.b16 %v1295
  %v2082 = vunpack.c.l.b16 %v1296
  %v2083 = vunpack.c.h.b16 %v1296
  %v2084 = vunpack.c.l.b16 %v1297
  %v2085 = vunpack.c.h.b16 %v1297
  %v2086 = vunpack.c.l.b16 %v1298
  %v2087 = vunpack.c.h.b16 %v1298
  %v2088 = vunpack.c.l.b16 %v1299
  %v2089 = vunpack.c.h.b16 %v1299
  %v2090 = vpack.c.b16 %v1582, %v1578
  %v2091 = vpack.c.b16 %v1583, %v1579
  %v2092 = vpack.c.b16 %v1584, %v1580
  %v2093 = vpack.c.b16 %v1585, %v1581
  %v2094 = vpack.c.b16 %v1590, %v1586
  %v2095 = vpack.c.b16 %v1591, %v1587
  %v2096 = vpack.c.b16 %v1592, %v1588
  %v2097 = vpack.c.b16 %v1593, %v1589
  %v2098 = vpack.c.b16 %v1598, %v1594
  %v2099 = vpack.c.b16 %v1599, %v1595
  %v2100 = vpack.c.b16 %v1600, %v1596
  %v2101 = vpack.c.b16 %v1601, %v1597
  %v2102 = vpack.c.b16 %v1606, %v1602
  %v2103 = vpack.c.b16 %v1607, %v1603
  %v2104 = vpack.c.b16 %v1608, %v1604
  %v2105 = vpack.c.b16 %v1609, %v1605
  %v2106 = vpack.c.b16 %v1614, %v1610
  %v2107 = vpack.c.b16 %v1615, %v1611
  %v2108 = vpack.c.b16 %v1616, %v1612
  %v2109 = vpack.c.b16 %v1617, %v1613
  %v2110 = vpack.c.b16 %v1622, %v1618
  %v2111 = vpack.c.b16 %v1623, %v1619
  %v2112 = vpack.c.b16 %v1624, %v1620
  %v2113 = vpack.c.b16 %v1625, %v1621
  %v2114 = vpack.c.b16 %v1630, %v1626
  %v2115 = vpack.c.b16 %v1631, %v1627
  %v2116 = vpack.c.b16 %v1632, %v1628
  %v2117 = vpack.c.b16 %v1633, %v1629
  %v2118 = vpack.c.b16 %v1638, %v1634
  %v2119 = vpack.c.b16 %v1639, %v1635
  %v2120 = vpack.c.b16 %v1640, %v1636
  %v2121 = vpack.c.b16 %v1641, %v1637
  %v2122 = vpack.c.b16 %v1646, %v1642
  %v2123 = vpack.c.b16 %v1647, %v1643
  %v2124 = vpack.c.b16 %v1648, %v1644
  %v2125 = vpack.c.b16 %v1649, %v1645
  %v2126 = vpack.c.b16 %v1654, %v1650
  %v2127 = vpack.c.b16 %v1655, %v1651
  %v2128 = vpack.c.b16 %v1656, %v1652
  %v2129 = vpack.c.b16 %v1657, %v1653
  %v2130 = vpack.c.b16 %v1662, %v1658
  %v2131 = vpack.c.b16 %v1663, %v1659
  %v2132 = vpack.c.b16 %v1664, %v1660
  %v2133 = vpack.c.b16 %v1665, %v1661
  %v2134 = vpack.c.b16 %v1670, %v1666
  %v2135 = vpack.c.b16 %v1671, %v1667
  %v2136 = vpack.c.b16 %v1672, %v1668
  %v2137 = vpack.c.b16 %v1673, %v1669
  %v2138 = vpack.c.b16 %v1678, %v1674
  %v2139 = vpack.c.b16 %v1679, %v1675
  %v2140 = vpack.c.b16 %v1680, %v1676
  %v2141 = vpack.c.b16 %v1681, %v1677
  %v2142 = vpack.c.b16 %v1686, %v1682
  %v2143 = vpack.c.b16 %v1687, %v1683
  %v2144 = vpack.c.b16 %v1688, %v1684
  %v2145 = vpack.c.b16 %v1689, %v1685
  %v2146 = vpack.c.b16 %v1694, %v1690
  %v2147 = vpack.c.b16 %v1695, %v1691
  %v2148 = vpack.c.b16 %v1696, %v1692
  %v2149 = vpack.c.b16 %v1697, %v1693
  %v2150 = vpack.c.b16 %v1702, %v1698
  %v2151 = vpack.c.b16 %v1703, %v1699
  %v2152 = vpack.c.b16 %v1704, %v1700
  %v2153 = vpack.c.b16 %v1705, %v1701
  %v2154 = vpack.c.b16 %v1710, %v1706
  %v2155 = vpack.c.b16 %v1711, %v1707
  %v2156 = vpack.c.b16 %v1712, %v1708
  %v2157 = vpack.c.b16 %v1713, %v1709
  %v2158 = vpack.c.b16 %v1718, %v1714
  %v2159 = vpack.c.b16 %v1719, %v1715
  %v2160 = vpack.c.b16 %v1720, %v1716
  %v2161 = vpack.c.b16 %v1721, %v1717
  %v2162 = vpack.c.b16 %v1726, %v1722
  %v2163 = vpack.c.b16 %v1727, %v1723
  %v2164 = vpack.c.b16 %v1728, %v1724
  %v2165 = vpack.c.b16 %v1729, %v1725
  %v2166 = vpack.c.b16 %v1734, %v1730
  %v2167 = vpack.c.b16 %v1735, %v1731
  %v2168 = vpack.c.b16 %v1736, %v1732
  %v2169 = vpack.c.b16 %v1737, %v1733
  %v2170 = vpack.c.b16 %v1742, %v1738
  %v2171 = vpack.c.b16 %v1743, %v1739
  %v2172 = vpack.c.b16 %v1744, %v1740
  %v2173 = vpack.c.b16 %v1745, %v1741
  %v2174 = vpack.c.b16 %v1750, %v1746
  %v2175 = vpack.c.b16 %v1751, %v1747
  %v2176 = vpack.c.b16 %v1752, %v1748
  %v2177 = vpack.c.b16 %v1753, %v1749
  %v2178 = vpack.c.b16 %v1758, %v1754
  %v2179 = vpack.c.b16 %v1759, %v1755
  %v2180 = vpack.c.b16 %v1760, %v1756
  %v2181 = vpack.c.b16 %v1761, %v1757
  %v2182 = vpack.c.b16 %v1766, %v1762
  %v2183 = vpack.c.b16 %v1767, %v1763
  %v2184 = vpack.c.b16 %v1768, %v1764
  %v2185 = vpack.c.b16 %v1769, %v1765
  %v2186 = vpack.c.b16 %v1774, %v1770
  %v2187 = vpack.c.b16 %v1775, %v1771
  %v2188 = vpack.c.b16 %v1776, %v1772
  %v2189 = vpack.c.b16 %v1777, %v1773
  %v2190 = vpack.c.b16 %v1782, %v1778
  %v2191 = vpack.c.b16 %v1783, %v1779
  %v2192 = vpack.c.b16 %v1784, %v1780
  %v2193 = vpack.c.b16 %v1785, %v1781
  %v2194 = vpack.c.b16 %v1790, %v1786
  %v2195 = vpack.c.b16 %v1791, %v1787
  %v2196 = vpack.c.b16 %v1792, %v1788
  %v2197 = vpack.c.b16 %v1793, %v1789
  %v2198 = vpack.c.b16 %v1798, %v1794
  %v2199 = vpack.c.b16 %v1799, %v1795
  %v2200 = vpack.c.b16 %v1800, %v1796
  %v2201 = vpack.c.b16 %v1801, %v1797
  %v2202 = vpack.c.b16 %v1806, %v1802
  %v2203 = vpack.c.b16 %v1807, %v1803
  %v2204 = vpack.c.b16 %v1808, %v1804
  %v2205 = vpack.c.b16 %v1809, %v1805
  %v2206 = vpack.c.b16 %v1814, %v1810
  %v2207 = vpack.c.b16 %v1815, %v1811
  %v2208 = vpack.c.b16 %v1816, %v1812
  %v2209 = vpack.c.b16 %v1817, %v1813
  %v2210 = vpack.c.b16 %v1822, %v1818
  %v2211 = vpack.c.b16 %v1823, %v1819
  %v2212 = vpack.c.b16 %v1824, %v1820
  %v2213 = vpack.c.b16 %v1825, %v1821
  %v2214 = vpack.c.b16 %v1830, %v1826
  %v2215 = vpack.c.b16 %v1831, %v1827
  %v2216 = vpack.c.b16 %v1832, %v1828
  %v2217 = vpack.c.b16 %v1833, %v1829
  %v2218 = vpack.c.b16 %v1838, %v1834
  %v2219 = vpack.c.b16 %v1839, %v1835
  %v2220 = vpack.c.b16 %v1840, %v1836
  %v2221 = vpack.c.b16 %v1841, %v1837
  %v2222 = vpack.c.b16 %v1846, %v1842
  %v2223 = vpack.c.b16 %v1847, %v1843
  %v2224 = vpack.c.b16 %v1848, %v1844
  %v2225 = vpack.c.b16 %v1849, %v1845
  %v2226 = vpack.c.b16 %v1854, %v1850
  %v2227 = vpack.c.b16 %v1855, %v1851
  %v2228 = vpack.c.b16 %v1856, %v1852
  %v2229 = vpack.c.b16 %v1857, %v1853
  %v2230 = vpack.c.b16 %v1862, %v1858
  %v2231 = vpack.c.b16 %v1863, %v1859
  %v2232 = vpack.c.b16 %v1864, %v1860
  %v2233 = vpack.c.b16 %v1865, %v1861
  %v2234 = vpack.c.b16 %v1870, %v1866
  %v2235 = vpack.c.b16 %v1871, %v1867
  %v2236 = vpack.c.b16 %v1872, %v1868
  %v2237 = vpack.c.b16 %v1873, %v1869
  %v2238 = vpack.c.b16 %v1878, %v1874
  %v2239 = vpack.c.b16 %v1879, %v1875
  %v2240 = vpack.c.b16 %v1880, %v1876
  %v2241 = vpack.c.b16 %v1881, %v1877
  %v2242 = vpack.c.b16 %v1886, %v1882
  %v2243 = vpack.c.b16 %v1887, %v1883
  %v2244 = vpack.c.b16 %v1888, %v1884
  %v2245 = vpack.c.b16 %v1889, %v1885
  %v2246 = vpack.c.b16 %v1894, %v1890
  %v2247 = vpack.c.b16 %v1895, %v1891
  %v2248 = vpack.c.b16 %v1896, %v1892
  %v2249 = vpack.c.b16 %v1897, %v1893
  %v2250 = vpack.c.b16 %v1902, %v1898
  %v2251 = vpack.c.b16 %v1903, %v1899
  %v2252 = vpack.c.b16 %v1904, %v1900
  %v2253 = vpack.c.b16 %v1905, %v1901
  %v2254 = vpack.c.b16 %v1910, %v1906
  %v2255 = vpack.c.b16 %v1911, %v1907
  %v2256 = vpack.c.b16 %v1912, %v1908
  %v2257 = vpack.c.b16 %v1913, %v1909
  %v2258 = vpack.c.b16 %v1918, %v1914
  %v2259 = vpack.c.b16 %v1919, %v1915
  %v2260 = vpack.c.b16 %v1920, %v1916
  %v2261 = vpack.c.b16 %v1921, %v1917
  %v2262 = vpack.c.b16 %v1926, %v1922
  %v2263 = vpack.c.b16 %v1927, %v1923
  %v2264 = vpack.c.b16 %v1928, %v1924
  %v2265 = vpack.c.b16 %v1929, %v1925
  %v2266 = vpack.c.b16 %v1934, %v1930
  %v2267 = vpack.c.b16 %v1935, %v1931
  %v2268 = vpack.c.b16 %v1936, %v1932
  %v2269 = vpack.c.b16 %v1937, %v1933
  %v2270 = vpack.c.b16 %v1942, %v1938
  %v2271 = vpack.c.b16 %v1943, %v1939
  %v2272 = vpack.c.b16 %v1944, %v1940
  %v2273 = vpack.c.b16 %v1945, %v1941
  %v2274 = vpack.c.b16 %v1950, %v1946
  %v2275 = vpack.c.b16 %v1951, %v1947
  %v2276 = vpack.c.b16 %v1952, %v1948
  %v2277 = vpack.c.b16 %v1953, %v1949
  %v2278 = vpack.c.b16 %v1958, %v1954
  %v2279 = vpack.c.b16 %v1959, %v1955
  %v2280 = vpack.c.b16 %v1960, %v1956
  %v2281 = vpack.c.b16 %v1961, %v1957
  %v2282 = vpack.c.b16 %v1966, %v1962
  %v2283 = vpack.c.b16 %v1967, %v1963
  %v2284 = vpack.c.b16 %v1968, %v1964
  %v2285 = vpack.c.b16 %v1969, %v1965
  %v2286 = vpack.c.b16 %v1974, %v1970
  %v2287 = vpack.c.b16 %v1975, %v1971
  %v2288 = vpack.c.b16 %v1976, %v1972
  %v2289 = vpack.c.b16 %v1977, %v1973
  %v2290 = vpack.c.b16 %v1982, %v1978
  %v2291 = vpack.c.b16 %v1983, %v1979
  %v2292 = vpack.c.b16 %v1984, %v1980
  %v2293 = vpack.c.b16 %v1985, %v1981
  %v2294 = vpack.c.b16 %v1990, %v1986
  %v2295 = vpack.c.b16 %v1991, %v1987
  %v2296 = vpack.c.b16 %v1992, %v1988
  %v2297 = vpack.c.b16 %v1993, %v1989
  %v2298 = vpack.c.b16 %v1998, %v1994
  %v2299 = vpack.c.b16 %v1999, %v1995
  %v2300 = vpack.c.b16 %v2000, %v1996
  %v2301 = vpack.c.b16 %v2001, %v1997
  %v2302 = vpack.c.b16 %v2006, %v2002
  %v2303 = vpack.c.b16 %v2007, %v2003
  %v2304 = vpack.c.b16 %v2008, %v2004
  %v2305 = vpack.c.b16 %v2009, %v2005
  %v2306 = vpack.c.b16 %v2014, %v2010
  %v2307 = vpack.c.b16 %v2015, %v2011
  %v2308 = vpack.c.b16 %v2016, %v2012
  %v2309 = vpack.c.b16 %v2017, %v2013
  %v2310 = vpack.c.b16 %v2022, %v2018
  %v2311 = vpack.c.b16 %v2023, %v2019
  %v2312 = vpack.c.b16 %v2024, %v2020
  %v2313 = vpack.c.b16 %v2025, %v2021
  %v2314 = vpack.c.b16 %v2030, %v2026
  %v2315 = vpack.c.b16 %v2031, %v2027
  %v2316 = vpack.c.b16 %v2032, %v2028
  %v2317 = vpack.c.b16 %v2033, %v2029
  %v2318 = vpack.c.b16 %v2038, %v2034
  %v2319 = vpack.c.b16 %v2039, %v2035
  %v2320 = vpack.c.b16 %v2040, %v2036
  %v2321 = vpack.c.b16 %v2041, %v2037
  %v2322 = vpack.c.b16 %v2046, %v2042
  %v2323 = vpack.c.b16 %v2047, %v2043
  %v2324 = vpack.c.b16 %v2048, %v2044
  %v2325 = vpack.c.b16 %v2049, %v2045
  %v2326 = vpack.c.b16 %v2054, %v2050
  %v2327 = vpack.c.b16 %v2055, %v2051
  %v2328 = vpack.c.b16 %v2056, %v2052
  %v2329 = vpack.c.b16 %v2057, %v2053
  %v2330 = vpack.c.b16 %v2062, %v2058
  %v2331 = vpack.c.b16 %v2063, %v2059
  %v2332 = vpack.c.b16 %v2064, %v2060
  %v2333 = vpack.c.b16 %v2065, %v2061
  %v2334 = vpack.c.b16 %v2070, %v2066
  %v2335 = vpack.c.b16 %v2071, %v2067
  %v2336 = vpack.c.b16 %v2072, %v2068
  %v2337 = vpack.c.b16 %v2073, %v2069
  %v2338 = vpack.c.b16 %v2078, %v2074
  %v2339 = vpack.c.b16 %v2079, %v2075
  %v2340 = vpack.c.b16 %v2080, %v2076
  %v2341 = vpack.c.b16 %v2081, %v2077
  %v2342 = vpack.c.b16 %v2086, %v2082
  %v2343 = vpack.c.b16 %v2087, %v2083
  %v2344 = vpack.c.b16 %v2088, %v2084
  %v2345 = vpack.c.b16 %v2089, %v2085
  %2602 = vmatprep.subr.bf16.mxu0 %v2091
  %2603 = vmatpush1.bf16.msra.mxu0 %v2090
  %2604 = vmatprep.subr.bf16.mxu0 %v2095
  %2605 = vmatpush1.bf16.msra.mxu0 %v2094
  %2606 = vmatprep.subr.bf16.mxu0 %v2099
  %2607 = vmatpush1.bf16.msra.mxu0 %v2098
  %2608 = vmatprep.subr.bf16.mxu0 %v2103
  %2609 = vmatpush1.bf16.msra.mxu0 %v2102
  %2610 = vmatprep.subr.bf16.mxu0 %v2107
  %2611 = vmatpush1.bf16.msra.mxu0 %v2106
  %2612 = vmatprep.subr.bf16.mxu0 %v2111
  %2613 = vmatpush1.bf16.msra.mxu0 %v2110
  %2614 = vmatprep.subr.bf16.mxu0 %v2115
  %2615 = vmatpush1.bf16.msra.mxu0 %v2114
  %2616 = vmatprep.subr.bf16.mxu0 %v2119
  %2617 = vmatpush1.bf16.msra.mxu0 %v2118
  %2618 = vmatprep.subr.bf16.mxu0 %v2123
  %2619 = vmatpush1.bf16.msra.mxu0 %v2122
  %2620 = vmatprep.subr.bf16.mxu0 %v2127
  %2621 = vmatpush1.bf16.msra.mxu0 %v2126
  %2622 = vmatprep.subr.bf16.mxu0 %v2131
  %2623 = vmatpush1.bf16.msra.mxu0 %v2130
  %2624 = vmatprep.subr.bf16.mxu0 %v2135
  %2625 = vmatpush1.bf16.msra.mxu0 %v2134
  %2626 = vmatprep.subr.bf16.mxu0 %v2139
  %2627 = vmatpush1.bf16.msra.mxu0 %v2138
  %2628 = vmatprep.subr.bf16.mxu0 %v2143
  %2629 = vmatpush1.bf16.msra.mxu0 %v2142
  %2630 = vmatprep.subr.bf16.mxu0 %v2147
  %2631 = vmatpush1.bf16.msra.mxu0 %v2146
  %2632 = vmatprep.subr.bf16.mxu0 %v2151
  %2633 = vmatpush1.bf16.msra.mxu0 %v2150
  %2634 = vmatprep.mubr.bf16.mxu0 %v1037
  %2635 = vmatmul.mubr.bf16.gmra.mrb[0].mxu0 %v1036
  %v2636 = vpop.f32.mrb[0].mxu0
  %v2637 = vadd.f32 %v1305, %v2636
  %v2638 = vpop.f32.mrb[0].mxu0
  %v2639 = vadd.f32 %v1309, %v2638
  %v2640 = vpop.f32.mrb[0].mxu0
  %v2641 = vpop.f32.mrb[0].mxu0
  %2642 = vdwg.mxu0
  %2643 = vmatprep.subr.bf16.mxu0 %v2155
  %2644 = vmatpush1.bf16.msra.mxu0 %v2154
  %2645 = vmatprep.subr.bf16.mxu0 %v2159
  %2646 = vmatpush1.bf16.msra.mxu0 %v2158
  %2647 = vmatprep.subr.bf16.mxu0 %v2163
  %2648 = vmatpush1.bf16.msra.mxu0 %v2162
  %2649 = vmatprep.subr.bf16.mxu0 %v2167
  %2650 = vmatpush1.bf16.msra.mxu0 %v2166
  %2651 = vmatprep.subr.bf16.mxu0 %v2171
  %2652 = vmatpush1.bf16.msra.mxu0 %v2170
  %2653 = vmatprep.subr.bf16.mxu0 %v2175
  %2654 = vmatpush1.bf16.msra.mxu0 %v2174
  %2655 = vmatprep.subr.bf16.mxu0 %v2179
  %2656 = vmatpush1.bf16.msra.mxu0 %v2178
  %2657 = vmatprep.subr.bf16.mxu0 %v2183
  %2658 = vmatpush1.bf16.msra.mxu0 %v2182
  %2659 = vmatprep.subr.bf16.mxu0 %v2187
  %2660 = vmatpush1.bf16.msra.mxu0 %v2186
  %2661 = vmatprep.subr.bf16.mxu0 %v2191
  %2662 = vmatpush1.bf16.msra.mxu0 %v2190
  %2663 = vmatprep.subr.bf16.mxu0 %v2195
  %2664 = vmatpush1.bf16.msra.mxu0 %v2194
  %2665 = vmatprep.subr.bf16.mxu0 %v2199
  %2666 = vmatpush1.bf16.msra.mxu0 %v2198
  %2667 = vmatprep.subr.bf16.mxu0 %v2203
  %2668 = vmatpush1.bf16.msra.mxu0 %v2202
  %2669 = vmatprep.subr.bf16.mxu0 %v2207
  %2670 = vmatpush1.bf16.msra.mxu0 %v2206
  %2671 = vmatprep.subr.bf16.mxu0 %v2211
  %2672 = vmatpush1.bf16.msra.mxu0 %v2210
  %2673 = vmatprep.subr.bf16.mxu0 %v2215
  %2674 = vmatpush1.bf16.msra.mxu0 %v2214
  %2675 = vmatprep.mubr.bf16.mxu0 %v1039
  %2676 = vmatmul.mubr.bf16.gmra.mrb[0].mxu0 %v1038
  %v2677 = vpop.f32.mrb[0].mxu0
  %v2678 = vadd.f32 %v2637, %v2677
  %v2679 = vpop.f32.mrb[0].mxu0
  %v2680 = vadd.f32 %v2639, %v2679
  %v2681 = vpop.f32.mrb[0].mxu0
  %v2682 = vpop.f32.mrb[0].mxu0
  %2683 = vdwg.mxu0
  %2684 = vmatprep.subr.bf16.mxu0 %v2219
  %2685 = vmatpush1.bf16.msra.mxu0 %v2218
  %2686 = vmatprep.subr.bf16.mxu0 %v2223
  %2687 = vmatpush1.bf16.msra.mxu0 %v2222
  %2688 = vmatprep.subr.bf16.mxu0 %v2227
  %2689 = vmatpush1.bf16.msra.mxu0 %v2226
  %2690 = vmatprep.subr.bf16.mxu0 %v2231
  %2691 = vmatpush1.bf16.msra.mxu0 %v2230
  %2692 = vmatprep.subr.bf16.mxu0 %v2235
  %2693 = vmatpush1.bf16.msra.mxu0 %v2234
  %2694 = vmatprep.subr.bf16.mxu0 %v2239
  %2695 = vmatpush1.bf16.msra.mxu0 %v2238
  %2696 = vmatprep.subr.bf16.mxu0 %v2243
  %2697 = vmatpush1.bf16.msra.mxu0 %v2242
  %2698 = vmatprep.subr.bf16.mxu0 %v2247
  %2699 = vmatpush1.bf16.msra.mxu0 %v2246
  %2700 = vmatprep.subr.bf16.mxu0 %v2251
  %2701 = vmatpush1.bf16.msra.mxu0 %v2250
  %2702 = vmatprep.subr.bf16.mxu0 %v2255
  %2703 = vmatpush1.bf16.msra.mxu0 %v2254
  %2704 = vmatprep.subr.bf16.mxu0 %v2259
  %2705 = vmatpush1.bf16.msra.mxu0 %v2258
  %2706 = vmatprep.subr.bf16.mxu0 %v2263
  %2707 = vmatpush1.bf16.msra.mxu0 %v2262
  %2708 = vmatprep.subr.bf16.mxu0 %v2267
  %2709 = vmatpush1.bf16.msra.mxu0 %v2266
  %2710 = vmatprep.subr.bf16.mxu0 %v2271
  %2711 = vmatpush1.bf16.msra.mxu0 %v2270
  %2712 = vmatprep.subr.bf16.mxu0 %v2275
  %2713 = vmatpush1.bf16.msra.mxu0 %v2274
  %2714 = vmatprep.subr.bf16.mxu0 %v2279
  %2715 = vmatpush1.bf16.msra.mxu0 %v2278
  %2716 = vmatprep.mubr.bf16.mxu0 %v1041
  %2717 = vmatmul.mubr.bf16.gmra.mrb[0].mxu0 %v1040
  %v2718 = vpop.f32.mrb[0].mxu0
  %v2719 = vadd.f32 %v2678, %v2718
  %v2720 = vpop.f32.mrb[0].mxu0
  %v2721 = vadd.f32 %v2680, %v2720
  %v2722 = vpop.f32.mrb[0].mxu0
  %v2723 = vpop.f32.mrb[0].mxu0
  %2724 = vdwg.mxu0
  %2725 = vmatprep.subr.bf16.mxu0 %v2283
  %2726 = vmatpush1.bf16.msra.mxu0 %v2282
  %2727 = vmatprep.subr.bf16.mxu0 %v2287
  %2728 = vmatpush1.bf16.msra.mxu0 %v2286
  %2729 = vmatprep.subr.bf16.mxu0 %v2291
  %2730 = vmatpush1.bf16.msra.mxu0 %v2290
  %2731 = vmatprep.subr.bf16.mxu0 %v2295
  %2732 = vmatpush1.bf16.msra.mxu0 %v2294
  %2733 = vmatprep.subr.bf16.mxu0 %v2299
  %2734 = vmatpush1.bf16.msra.mxu0 %v2298
  %2735 = vmatprep.subr.bf16.mxu0 %v2303
  %2736 = vmatpush1.bf16.msra.mxu0 %v2302
  %2737 = vmatprep.subr.bf16.mxu0 %v2307
  %2738 = vmatpush1.bf16.msra.mxu0 %v2306
  %2739 = vmatprep.subr.bf16.mxu0 %v2311
  %2740 = vmatpush1.bf16.msra.mxu0 %v2310
  %2741 = vmatprep.subr.bf16.mxu0 %v2315
  %2742 = vmatpush1.bf16.msra.mxu0 %v2314
  %2743 = vmatprep.subr.bf16.mxu0 %v2319
  %2744 = vmatpush1.bf16.msra.mxu0 %v2318
  %2745 = vmatprep.subr.bf16.mxu0 %v2323
  %2746 = vmatpush1.bf16.msra.mxu0 %v2322
  %2747 = vmatprep.subr.bf16.mxu0 %v2327
  %2748 = vmatpush1.bf16.msra.mxu0 %v2326
  %2749 = vmatprep.subr.bf16.mxu0 %v2331
  %2750 = vmatpush1.bf16.msra.mxu0 %v2330
  %2751 = vmatprep.subr.bf16.mxu0 %v2335
  %2752 = vmatpush1.bf16.msra.mxu0 %v2334
  %2753 = vmatprep.subr.bf16.mxu0 %v2339
  %2754 = vmatpush1.bf16.msra.mxu0 %v2338
  %2755 = vmatprep.subr.bf16.mxu0 %v2343
  %2756 = vmatpush1.bf16.msra.mxu0 %v2342
  %2757 = vmatprep.mubr.bf16.mxu0 %v1043
  %2758 = vmatmul.mubr.bf16.gmra.mrb[0].mxu0 %v1042
  %v2759 = vpop.f32.mrb[0].mxu0
  %v2760 = vadd.f32 %v2719, %v2759
  %v2761 = vpop.f32.mrb[0].mxu0
  %v2762 = vadd.f32 %v2721, %v2761
  %v2763 = vpop.f32.mrb[0].mxu0
  %v2764 = vpop.f32.mrb[0].mxu0
  %2765 = vdwg.mxu0
  %2766 = vmatprep.subr.bf16.mxu0 %v2093
  %2767 = vmatpush1.bf16.msra.mxu0 %v2092
  %2768 = vmatprep.subr.bf16.mxu0 %v2097
  %2769 = vmatpush1.bf16.msra.mxu0 %v2096
  %2770 = vmatprep.subr.bf16.mxu0 %v2101
  %2771 = vmatpush1.bf16.msra.mxu0 %v2100
  %2772 = vmatprep.subr.bf16.mxu0 %v2105
  %2773 = vmatpush1.bf16.msra.mxu0 %v2104
  %2774 = vmatprep.subr.bf16.mxu0 %v2109
  %2775 = vmatpush1.bf16.msra.mxu0 %v2108
  %2776 = vmatprep.subr.bf16.mxu0 %v2113
  %2777 = vmatpush1.bf16.msra.mxu0 %v2112
  %2778 = vmatprep.subr.bf16.mxu0 %v2117
  %2779 = vmatpush1.bf16.msra.mxu0 %v2116
  %2780 = vmatprep.subr.bf16.mxu0 %v2121
  %2781 = vmatpush1.bf16.msra.mxu0 %v2120
  %2782 = vmatprep.subr.bf16.mxu0 %v2125
  %2783 = vmatpush1.bf16.msra.mxu0 %v2124
  %2784 = vmatprep.subr.bf16.mxu0 %v2129
  %2785 = vmatpush1.bf16.msra.mxu0 %v2128
  %2786 = vmatprep.subr.bf16.mxu0 %v2133
  %2787 = vmatpush1.bf16.msra.mxu0 %v2132
  %2788 = vmatprep.subr.bf16.mxu0 %v2137
  %2789 = vmatpush1.bf16.msra.mxu0 %v2136
  %2790 = vmatprep.subr.bf16.mxu0 %v2141
  %2791 = vmatpush1.bf16.msra.mxu0 %v2140
  %2792 = vmatprep.subr.bf16.mxu0 %v2145
  %2793 = vmatpush1.bf16.msra.mxu0 %v2144
  %2794 = vmatprep.subr.bf16.mxu0 %v2149
  %2795 = vmatpush1.bf16.msra.mxu0 %v2148
  %2796 = vmatprep.subr.bf16.mxu0 %v2153
  %2797 = vmatpush1.bf16.msra.mxu0 %v2152
  %2798 = vmatprep.mubr.bf16.mxu0 %v1037
  %2799 = vmatmul.mubr.bf16.gmra.mrb[0].mxu0 %v1036
  %v2800 = vpop.f32.mrb[0].mxu0
  %v2801 = vadd.f32 %v1313, %v2800
  %v2802 = vpop.f32.mrb[0].mxu0
  %v2803 = vadd.f32 %v1317, %v2802
  %v2804 = vpop.f32.mrb[0].mxu0
  %v2805 = vpop.f32.mrb[0].mxu0
  %2806 = vdwg.mxu0
  %2807 = vmatprep.subr.bf16.mxu0 %v2157
  %2808 = vmatpush1.bf16.msra.mxu0 %v2156
  %2809 = vmatprep.subr.bf16.mxu0 %v2161
  %2810 = vmatpush1.bf16.msra.mxu0 %v2160
  %2811 = vmatprep.subr.bf16.mxu0 %v2165
  %2812 = vmatpush1.bf16.msra.mxu0 %v2164
  %2813 = vmatprep.subr.bf16.mxu0 %v2169
  %2814 = vmatpush1.bf16.msra.mxu0 %v2168
  %2815 = vmatprep.subr.bf16.mxu0 %v2173
  %2816 = vmatpush1.bf16.msra.mxu0 %v2172
  %2817 = vmatprep.subr.bf16.mxu0 %v2177
  %2818 = vmatpush1.bf16.msra.mxu0 %v2176
  %2819 = vmatprep.subr.bf16.mxu0 %v2181
  %2820 = vmatpush1.bf16.msra.mxu0 %v2180
  %2821 = vmatprep.subr.bf16.mxu0 %v2185
  %2822 = vmatpush1.bf16.msra.mxu0 %v2184
  %2823 = vmatprep.subr.bf16.mxu0 %v2189
  %2824 = vmatpush1.bf16.msra.mxu0 %v2188
  %2825 = vmatprep.subr.bf16.mxu0 %v2193
  %2826 = vmatpush1.bf16.msra.mxu0 %v2192
  %2827 = vmatprep.subr.bf16.mxu0 %v2197
  %2828 = vmatpush1.bf16.msra.mxu0 %v2196
  %2829 = vmatprep.subr.bf16.mxu0 %v2201
  %2830 = vmatpush1.bf16.msra.mxu0 %v2200
  %2831 = vmatprep.subr.bf16.mxu0 %v2205
  %2832 = vmatpush1.bf16.msra.mxu0 %v2204
  %2833 = vmatprep.subr.bf16.mxu0 %v2209
  %2834 = vmatpush1.bf16.msra.mxu0 %v2208
  %2835 = vmatprep.subr.bf16.mxu0 %v2213
  %2836 = vmatpush1.bf16.msra.mxu0 %v2212
  %2837 = vmatprep.subr.bf16.mxu0 %v2217
  %2838 = vmatpush1.bf16.msra.mxu0 %v2216
  %2839 = vmatprep.mubr.bf16.mxu0 %v1039
  %2840 = vmatmul.mubr.bf16.gmra.mrb[0].mxu0 %v1038
  %v2841 = vpop.f32.mrb[0].mxu0
  %v2842 = vadd.f32 %v2801, %v2841
  %v2843 = vpop.f32.mrb[0].mxu0
  %v2844 = vadd.f32 %v2803, %v2843
  %v2845 = vpop.f32.mrb[0].mxu0
  %v2846 = vpop.f32.mrb[0].mxu0
  %2847 = vdwg.mxu0
  %2848 = vmatprep.subr.bf16.mxu0 %v2221
  %2849 = vmatpush1.bf16.msra.mxu0 %v2220
  %2850 = vmatprep.subr.bf16.mxu0 %v2225
  %2851 = vmatpush1.bf16.msra.mxu0 %v2224
  %2852 = vmatprep.subr.bf16.mxu0 %v2229
  %2853 = vmatpush1.bf16.msra.mxu0 %v2228
  %2854 = vmatprep.subr.bf16.mxu0 %v2233
  %2855 = vmatpush1.bf16.msra.mxu0 %v2232
  %2856 = vmatprep.subr.bf16.mxu0 %v2237
  %2857 = vmatpush1.bf16.msra.mxu0 %v2236
  %2858 = vmatprep.subr.bf16.mxu0 %v2241
  %2859 = vmatpush1.bf16.msra.mxu0 %v2240
  %2860 = vmatprep.subr.bf16.mxu0 %v2245
  %2861 = vmatpush1.bf16.msra.mxu0 %v2244
  %2862 = vmatprep.subr.bf16.mxu0 %v2249
  %2863 = vmatpush1.bf16.msra.mxu0 %v2248
  %2864 = vmatprep.subr.bf16.mxu0 %v2253
  %2865 = vmatpush1.bf16.msra.mxu0 %v2252
  %2866 = vmatprep.subr.bf16.mxu0 %v2257
  %2867 = vmatpush1.bf16.msra.mxu0 %v2256
  %2868 = vmatprep.subr.bf16.mxu0 %v2261
  %2869 = vmatpush1.bf16.msra.mxu0 %v2260
  %2870 = vmatprep.subr.bf16.mxu0 %v2265
  %2871 = vmatpush1.bf16.msra.mxu0 %v2264
  %2872 = vmatprep.subr.bf16.mxu0 %v2269
  %2873 = vmatpush1.bf16.msra.mxu0 %v2268
  %2874 = vmatprep.subr.bf16.mxu0 %v2273
  %2875 = vmatpush1.bf16.msra.mxu0 %v2272
  %2876 = vmatprep.subr.bf16.mxu0 %v2277
  %2877 = vmatpush1.bf16.msra.mxu0 %v2276
  %2878 = vmatprep.subr.bf16.mxu0 %v2281
  %2879 = vmatpush1.bf16.msra.mxu0 %v2280
  %2880 = vmatprep.mubr.bf16.mxu0 %v1041
  %2881 = vmatmul.mubr.bf16.gmra.mrb[0].mxu0 %v1040
  %v2882 = vpop.f32.mrb[0].mxu0
  %v2883 = vadd.f32 %v2842, %v2882
  %v2884 = vpop.f32.mrb[0].mxu0
  %v2885 = vadd.f32 %v2844, %v2884
  %v2886 = vpop.f32.mrb[0].mxu0
  %v2887 = vpop.f32.mrb[0].mxu0
  %2888 = vdwg.mxu0
  %2889 = vmatprep.subr.bf16.mxu0 %v2285
  %2890 = vmatpush1.bf16.msra.mxu0 %v2284
  %2891 = vmatprep.subr.bf16.mxu0 %v2289
  %2892 = vmatpush1.bf16.msra.mxu0 %v2288
  %2893 = vmatprep.subr.bf16.mxu0 %v2293
  %2894 = vmatpush1.bf16.msra.mxu0 %v2292
  %2895 = vmatprep.subr.bf16.mxu0 %v2297
  %2896 = vmatpush1.bf16.msra.mxu0 %v2296
  %2897 = vmatprep.subr.bf16.mxu0 %v2301
  %2898 = vmatpush1.bf16.msra.mxu0 %v2300
  %2899 = vmatprep.subr.bf16.mxu0 %v2305
  %2900 = vmatpush1.bf16.msra.mxu0 %v2304
  %2901 = vmatprep.subr.bf16.mxu0 %v2309
  %2902 = vmatpush1.bf16.msra.mxu0 %v2308
  %2903 = vmatprep.subr.bf16.mxu0 %v2313
  %2904 = vmatpush1.bf16.msra.mxu0 %v2312
  %2905 = vmatprep.subr.bf16.mxu0 %v2317
  %2906 = vmatpush1.bf16.msra.mxu0 %v2316
  %2907 = vmatprep.subr.bf16.mxu0 %v2321
  %2908 = vmatpush1.bf16.msra.mxu0 %v2320
  %2909 = vmatprep.subr.bf16.mxu0 %v2325
  %2910 = vmatpush1.bf16.msra.mxu0 %v2324
  %2911 = vmatprep.subr.bf16.mxu0 %v2329
  %2912 = vmatpush1.bf16.msra.mxu0 %v2328
  %2913 = vmatprep.subr.bf16.mxu0 %v2333
  %2914 = vmatpush1.bf16.msra.mxu0 %v2332
  %2915 = vmatprep.subr.bf16.mxu0 %v2337
  %2916 = vmatpush1.bf16.msra.mxu0 %v2336
  %2917 = vmatprep.subr.bf16.mxu0 %v2341
  %2918 = vmatpush1.bf16.msra.mxu0 %v2340
  %2919 = vmatprep.subr.bf16.mxu0 %v2345
  %2920 = vmatpush1.bf16.msra.mxu0 %v2344
  %2921 = vmatprep.mubr.bf16.mxu0 %v1043
  %2922 = vmatmul.mubr.bf16.gmra.mrb[0].mxu0 %v1042
  %v2923 = vpop.f32.mrb[0].mxu0
  %v2924 = vadd.f32 %v2883, %v2923
  %v2925 = vpop.f32.mrb[0].mxu0
  %v2926 = vadd.f32 %v2885, %v2925
  %v2927 = vpop.f32.mrb[0].mxu0
  %v2928 = vpop.f32.mrb[0].mxu0
  %2929 = vdwg.mxu0
  %vm2930 = vcmp.gt.f32.partialorder %v2760, 0.0
  %vm2931 = vcmp.gt.f32.partialorder %v2762, 0.0
  %vm2932 = vcmp.gt.f32.partialorder %v2924, 0.0
  %vm2933 = vcmp.gt.f32.partialorder %v2926, 0.0
  %v2934 = vmul.f32 %v2760, 0.1
  %v2935 = vmul.f32 %v2762, 0.1
  %v2936 = vmul.f32 %v2924, 0.1
  %v2937 = vmul.f32 %v2926, 0.1
  %v2938 = vsel %vm2930, %v2760, %v2934
  %v2939 = vsel %vm2931, %v2762, %v2935
  %v2940 = vsel %vm2932, %v2924, %v2936
  %v2941 = vsel %vm2933, %v2926, %v2937
  %v2942 = vpack.c.bf16 %v2938, %v2938
  %v2943 = vpack.c.bf16 %v2939, %v2939
  %v2944 = vpack.c.bf16 %v2940, %v2940
  %v2945 = vpack.c.bf16 %v2941, %v2941
  %v2946 = vld [vmem:[%s5] sm:$0xff]
  %v2947 = vld [vmem:[%s5 + $0x8] sm:$0xff]
  %v2948 = vld [vmem:[%s5 + $0x10] sm:$0xff]
  %v2949 = vld [vmem:[%s5 + $0x18] sm:$0xff]
  %v2950 = vld [vmem:[%s5 + $0x20] sm:$0xff]
  %v2951 = vld [vmem:[%s5 + $0x28] sm:$0xff]
  %v2952 = vld [vmem:[%s5 + $0x30] sm:$0xff]
  %v2953 = vld [vmem:[%s5 + $0x38] sm:$0xff]
  %v2954 = vld [vmem:[%s5 + $0x40] sm:$0xff]
  %v2955 = vld [vmem:[%s5 + $0x48] sm:$0xff]
  %v2956 = vld [vmem:[%s5 + $0x50] sm:$0xff]
  %v2957 = vld [vmem:[%s5 + $0x58] sm:$0xff]
  %v2958 = vld [vmem:[%s5 + $0x60] sm:$0xff]
  %v2959 = vld [vmem:[%s5 + $0x68] sm:$0xff]
  %v2960 = vld [vmem:[%s5 + $0x70] sm:$0xff]
  %v2961 = vld [vmem:[%s5 + $0x78] sm:$0xff]
  %v2962 = vld [vmem:[%s5 + $0x80] sm:$0xff]
  %v2963 = vld [vmem:[%s5 + $0x88] sm:$0xff]
  %v2964 = vld [vmem:[%s5 + $0x90] sm:$0xff]
  %v2965 = vld [vmem:[%s5 + $0x98] sm:$0xff]
  %v2966 = vld [vmem:[%s5 + $0xa0] sm:$0xff]
  %v2967 = vld [vmem:[%s5 + $0xa8] sm:$0xff]
  %v2968 = vld [vmem:[%s5 + $0xb0] sm:$0xff]
  %v2969 = vld [vmem:[%s5 + $0xb8] sm:$0xff]
  %v2970 = vld [vmem:[%s5 + $0xc0] sm:$0xff]
  %v2971 = vld [vmem:[%s5 + $0xc8] sm:$0xff]
  %v2972 = vld [vmem:[%s5 + $0xd0] sm:$0xff]
  %v2973 = vld [vmem:[%s5 + $0xd8] sm:$0xff]
  %v2974 = vld [vmem:[%s5 + $0xe0] sm:$0xff]
  %v2975 = vld [vmem:[%s5 + $0xe8] sm:$0xff]
  %v2976 = vld [vmem:[%s5 + $0xf0] sm:$0xff]
  %v2977 = vld [vmem:[%s5 + $0xf8] sm:$0xff]
  %v2978 = vld [vmem:[%s5 + $0x100] sm:$0xff]
  %v2979 = vld [vmem:[%s5 + $0x108] sm:$0xff]
  %v2980 = vld [vmem:[%s5 + $0x110] sm:$0xff]
  %v2981 = vld [vmem:[%s5 + $0x118] sm:$0xff]
  %v2982 = vld [vmem:[%s5 + $0x120] sm:$0xff]
  %v2983 = vld [vmem:[%s5 + $0x128] sm:$0xff]
  %v2984 = vld [vmem:[%s5 + $0x130] sm:$0xff]
  %v2985 = vld [vmem:[%s5 + $0x138] sm:$0xff]
  %v2986 = vld [vmem:[%s5 + $0x140] sm:$0xff]
  %v2987 = vld [vmem:[%s5 + $0x148] sm:$0xff]
  %v2988 = vld [vmem:[%s5 + $0x150] sm:$0xff]
  %v2989 = vld [vmem:[%s5 + $0x158] sm:$0xff]
  %v2990 = vld [vmem:[%s5 + $0x160] sm:$0xff]
  %v2991 = vld [vmem:[%s5 + $0x168] sm:$0xff]
  %v2992 = vld [vmem:[%s5 + $0x170] sm:$0xff]
  %v2993 = vld [vmem:[%s5 + $0x178] sm:$0xff]
  %v2994 = vld [vmem:[%s5 + $0x180] sm:$0xff]
  %v2995 = vld [vmem:[%s5 + $0x188] sm:$0xff]
  %v2996 = vld [vmem:[%s5 + $0x190] sm:$0xff]
  %v2997 = vld [vmem:[%s5 + $0x198] sm:$0xff]
  %v2998 = vld [vmem:[%s5 + $0x1a0] sm:$0xff]
  %v2999 = vld [vmem:[%s5 + $0x1a8] sm:$0xff]
  %v3000 = vld [vmem:[%s5 + $0x1b0] sm:$0xff]
  %v3001 = vld [vmem:[%s5 + $0x1b8] sm:$0xff]
  %v3002 = vld [vmem:[%s5 + $0x1c0] sm:$0xff]
  %v3003 = vld [vmem:[%s5 + $0x1c8] sm:$0xff]
  %v3004 = vld [vmem:[%s5 + $0x1d0] sm:$0xff]
  %v3005 = vld [vmem:[%s5 + $0x1d8] sm:$0xff]
  %v3006 = vld [vmem:[%s5 + $0x1e0] sm:$0xff]
  %v3007 = vld [vmem:[%s5 + $0x1e8] sm:$0xff]
  %v3008 = vld [vmem:[%s5 + $0x1f0] sm:$0xff]
  %v3009 = vld [vmem:[%s5 + $0x1f8] sm:$0xff]
  %v3010 = vld [vmem:[%s6] sm:$0x3]
  %v3012 = vlaneseq
  %v3013 = vshrl.u32 %v3012, 7
  %v3014 = vsub.s32 0, %v3013
  %v3015 = vrot.slane %v3010, %v3014
  %v3016 = vlaneseq
  %v3017 = vshrl.u32 %v3016, 7
  %v3018 = vsub.s32 1, %v3017
  %v3019 = vrot.slane %v3010, %v3018
  %v3086 = vunpack.c.l.b16 %v2946
  %v3087 = vunpack.c.h.b16 %v2946
  %v3088 = vunpack.c.l.b16 %v2947
  %v3089 = vunpack.c.h.b16 %v2947
  %v3090 = vunpack.c.l.b16 %v2948
  %v3091 = vunpack.c.h.b16 %v2948
  %v3092 = vunpack.c.l.b16 %v2949
  %v3093 = vunpack.c.h.b16 %v2949
  %v3094 = vunpack.c.l.b16 %v2950
  %v3095 = vunpack.c.h.b16 %v2950
  %v3096 = vunpack.c.l.b16 %v2951
  %v3097 = vunpack.c.h.b16 %v2951
  %v3098 = vunpack.c.l.b16 %v2952
  %v3099 = vunpack.c.h.b16 %v2952
  %v3100 = vunpack.c.l.b16 %v2953
  %v3101 = vunpack.c.h.b16 %v2953
  %v3102 = vunpack.c.l.b16 %v2954
  %v3103 = vunpack.c.h.b16 %v2954
  %v3104 = vunpack.c.l.b16 %v2955
  %v3105 = vunpack.c.h.b16 %v2955
  %v3106 = vunpack.c.l.b16 %v2956
  %v3107 = vunpack.c.h.b16 %v2956
  %v3108 = vunpack.c.l.b16 %v2957
  %v3109 = vunpack.c.h.b16 %v2957
  %v3110 = vunpack.c.l.b16 %v2958
  %v3111 = vunpack.c.h.b16 %v2958
  %v3112 = vunpack.c.l.b16 %v2959
  %v3113 = vunpack.c.h.b16 %v2959
  %v3114 = vunpack.c.l.b16 %v2960
  %v3115 = vunpack.c.h.b16 %v2960
  %v3116 = vunpack.c.l.b16 %v2961
  %v3117 = vunpack.c.h.b16 %v2961
  %v3118 = vunpack.c.l.b16 %v2962
  %v3119 = vunpack.c.h.b16 %v2962
  %v3120 = vunpack.c.l.b16 %v2963
  %v3121 = vunpack.c.h.b16 %v2963
  %v3122 = vunpack.c.l.b16 %v2964
  %v3123 = vunpack.c.h.b16 %v2964
  %v3124 = vunpack.c.l.b16 %v2965
  %v3125 = vunpack.c.h.b16 %v2965
  %v3126 = vunpack.c.l.b16 %v2966
  %v3127 = vunpack.c.h.b16 %v2966
  %v3128 = vunpack.c.l.b16 %v2967
  %v3129 = vunpack.c.h.b16 %v2967
  %v3130 = vunpack.c.l.b16 %v2968
  %v3131 = vunpack.c.h.b16 %v2968
  %v3132 = vunpack.c.l.b16 %v2969
  %v3133 = vunpack.c.h.b16 %v2969
  %v3134 = vunpack.c.l.b16 %v2970
  %v3135 = vunpack.c.h.b16 %v2970
  %v3136 = vunpack.c.l.b16 %v2971
  %v3137 = vunpack.c.h.b16 %v2971
  %v3138 = vunpack.c.l.b16 %v2972
  %v3139 = vunpack.c.h.b16 %v2972
  %v3140 = vunpack.c.l.b16 %v2973
  %v3141 = vunpack.c.h.b16 %v2973
  %v3142 = vunpack.c.l.b16 %v2974
  %v3143 = vunpack.c.h.b16 %v2974
  %v3144 = vunpack.c.l.b16 %v2975
  %v3145 = vunpack.c.h.b16 %v2975
  %v3146 = vunpack.c.l.b16 %v2976
  %v3147 = vunpack.c.h.b16 %v2976
  %v3148 = vunpack.c.l.b16 %v2977
  %v3149 = vunpack.c.h.b16 %v2977
  %v3150 = vunpack.c.l.b16 %v2978
  %v3151 = vunpack.c.h.b16 %v2978
  %v3152 = vunpack.c.l.b16 %v2979
  %v3153 = vunpack.c.h.b16 %v2979
  %v3154 = vunpack.c.l.b16 %v2980
  %v3155 = vunpack.c.h.b16 %v2980
  %v3156 = vunpack.c.l.b16 %v2981
  %v3157 = vunpack.c.h.b16 %v2981
  %v3158 = vunpack.c.l.b16 %v2982
  %v3159 = vunpack.c.h.b16 %v2982
  %v3160 = vunpack.c.l.b16 %v2983
  %v3161 = vunpack.c.h.b16 %v2983
  %v3162 = vunpack.c.l.b16 %v2984
  %v3163 = vunpack.c.h.b16 %v2984
  %v3164 = vunpack.c.l.b16 %v2985
  %v3165 = vunpack.c.h.b16 %v2985
  %v3166 = vunpack.c.l.b16 %v2986
  %v3167 = vunpack.c.h.b16 %v2986
  %v3168 = vunpack.c.l.b16 %v2987
  %v3169 = vunpack.c.h.b16 %v2987
  %v3170 = vunpack.c.l.b16 %v2988
  %v3171 = vunpack.c.h.b16 %v2988
  %v3172 = vunpack.c.l.b16 %v2989
  %v3173 = vunpack.c.h.b16 %v2989
  %v3174 = vunpack.c.l.b16 %v2990
  %v3175 = vunpack.c.h.b16 %v2990
  %v3176 = vunpack.c.l.b16 %v2991
  %v3177 = vunpack.c.h.b16 %v2991
  %v3178 = vunpack.c.l.b16 %v2992
  %v3179 = vunpack.c.h.b16 %v2992
  %v3180 = vunpack.c.l.b16 %v2993
  %v3181 = vunpack.c.h.b16 %v2993
  %v3182 = vunpack.c.l.b16 %v2994
  %v3183 = vunpack.c.h.b16 %v2994
  %v3184 = vunpack.c.l.b16 %v2995
  %v3185 = vunpack.c.h.b16 %v2995
  %v3186 = vunpack.c.l.b16 %v2996
  %v3187 = vunpack.c.h.b16 %v2996
  %v3188 = vunpack.c.l.b16 %v2997
  %v3189 = vunpack.c.h.b16 %v2997
  %v3190 = vunpack.c.l.b16 %v2998
  %v3191 = vunpack.c.h.b16 %v2998
  %v3192 = vunpack.c.l.b16 %v2999
  %v3193 = vunpack.c.h.b16 %v2999
  %v3194 = vunpack.c.l.b16 %v3000
  %v3195 = vunpack.c.h.b16 %v3000
  %v3196 = vunpack.c.l.b16 %v3001
  %v3197 = vunpack.c.h.b16 %v3001
  %v3198 = vunpack.c.l.b16 %v3002
  %v3199 = vunpack.c.h.b16 %v3002
  %v3200 = vunpack.c.l.b16 %v3003
  %v3201 = vunpack.c.h.b16 %v3003
  %v3202 = vunpack.c.l.b16 %v3004
  %v3203 = vunpack.c.h.b16 %v3004
  %v3204 = vunpack.c.l.b16 %v3005
  %v3205 = vunpack.c.h.b16 %v3005
  %v3206 = vunpack.c.l.b16 %v3006
  %v3207 = vunpack.c.h.b16 %v3006
  %v3208 = vunpack.c.l.b16 %v3007
  %v3209 = vunpack.c.h.b16 %v3007
  %v3210 = vunpack.c.l.b16 %v3008
  %v3211 = vunpack.c.h.b16 %v3008
  %v3212 = vunpack.c.l.b16 %v3009
  %v3213 = vunpack.c.h.b16 %v3009
  %v3214 = vpack.c.b16 %v3088, %v3086
  %v3215 = vpack.c.b16 %v3089, %v3087
  %v3216 = vpack.c.b16 %v3092, %v3090
  %v3217 = vpack.c.b16 %v3093, %v3091
  %v3218 = vpack.c.b16 %v3096, %v3094
  %v3219 = vpack.c.b16 %v3097, %v3095
  %v3220 = vpack.c.b16 %v3100, %v3098
  %v3221 = vpack.c.b16 %v3101, %v3099
  %v3222 = vpack.c.b16 %v3104, %v3102
  %v3223 = vpack.c.b16 %v3105, %v3103
  %v3224 = vpack.c.b16 %v3108, %v3106
  %v3225 = vpack.c.b16 %v3109, %v3107
  %v3226 = vpack.c.b16 %v3112, %v3110
  %v3227 = vpack.c.b16 %v3113, %v3111
  %v3228 = vpack.c.b16 %v3116, %v3114
  %v3229 = vpack.c.b16 %v3117, %v3115
  %v3230 = vpack.c.b16 %v3120, %v3118
  %v3231 = vpack.c.b16 %v3121, %v3119
  %v3232 = vpack.c.b16 %v3124, %v3122
  %v3233 = vpack.c.b16 %v3125, %v3123
  %v3234 = vpack.c.b16 %v3128, %v3126
  %v3235 = vpack.c.b16 %v3129, %v3127
  %v3236 = vpack.c.b16 %v3132, %v3130
  %v3237 = vpack.c.b16 %v3133, %v3131
  %v3238 = vpack.c.b16 %v3136, %v3134
  %v3239 = vpack.c.b16 %v3137, %v3135
  %v3240 = vpack.c.b16 %v3140, %v3138
  %v3241 = vpack.c.b16 %v3141, %v3139
  %v3242 = vpack.c.b16 %v3144, %v3142
  %v3243 = vpack.c.b16 %v3145, %v3143
  %v3244 = vpack.c.b16 %v3148, %v3146
  %v3245 = vpack.c.b16 %v3149, %v3147
  %v3246 = vpack.c.b16 %v3152, %v3150
  %v3247 = vpack.c.b16 %v3153, %v3151
  %v3248 = vpack.c.b16 %v3156, %v3154
  %v3249 = vpack.c.b16 %v3157, %v3155
  %v3250 = vpack.c.b16 %v3160, %v3158
  %v3251 = vpack.c.b16 %v3161, %v3159
  %v3252 = vpack.c.b16 %v3164, %v3162
  %v3253 = vpack.c.b16 %v3165, %v3163
  %v3254 = vpack.c.b16 %v3168, %v3166
  %v3255 = vpack.c.b16 %v3169, %v3167
  %v3256 = vpack.c.b16 %v3172, %v3170
  %v3257 = vpack.c.b16 %v3173, %v3171
  %v3258 = vpack.c.b16 %v3176, %v3174
  %v3259 = vpack.c.b16 %v3177, %v3175
  %v3260 = vpack.c.b16 %v3180, %v3178
  %v3261 = vpack.c.b16 %v3181, %v3179
  %v3262 = vpack.c.b16 %v3184, %v3182
  %v3263 = vpack.c.b16 %v3185, %v3183
  %v3264 = vpack.c.b16 %v3188, %v3186
  %v3265 = vpack.c.b16 %v3189, %v3187
  %v3266 = vpack.c.b16 %v3192, %v3190
  %v3267 = vpack.c.b16 %v3193, %v3191
  %v3268 = vpack.c.b16 %v3196, %v3194
  %v3269 = vpack.c.b16 %v3197, %v3195
  %v3270 = vpack.c.b16 %v3200, %v3198
  %v3271 = vpack.c.b16 %v3201, %v3199
  %v3272 = vpack.c.b16 %v3204, %v3202
  %v3273 = vpack.c.b16 %v3205, %v3203
  %v3274 = vpack.c.b16 %v3208, %v3206
  %v3275 = vpack.c.b16 %v3209, %v3207
  %v3276 = vpack.c.b16 %v3212, %v3210
  %v3277 = vpack.c.b16 %v3213, %v3211
  %3342 = vmatprep.subr.bf16.mxu0 %v3215
  %3343 = vmatpush1.bf16.msra.mxu0 %v3214
  %3344 = vmatprep.subr.bf16.mxu0 %v3217
  %3345 = vmatpush1.bf16.msra.mxu0 %v3216
  %3346 = vmatprep.subr.bf16.mxu0 %v3219
  %3347 = vmatpush1.bf16.msra.mxu0 %v3218
  %3348 = vmatprep.subr.bf16.mxu0 %v3221
  %3349 = vmatpush1.bf16.msra.mxu0 %v3220
  %3350 = vmatprep.subr.bf16.mxu0 %v3223
  %3351 = vmatpush1.bf16.msra.mxu0 %v3222
  %3352 = vmatprep.subr.bf16.mxu0 %v3225
  %3353 = vmatpush1.bf16.msra.mxu0 %v3224
  %3354 = vmatprep.subr.bf16.mxu0 %v3227
  %3355 = vmatpush1.bf16.msra.mxu0 %v3226
  %3356 = vmatprep.subr.bf16.mxu0 %v3229
  %3357 = vmatpush1.bf16.msra.mxu0 %v3228
  %3358 = vmatprep.subr.bf16.mxu0 %v3231
  %3359 = vmatpush1.bf16.msra.mxu0 %v3230
  %3360 = vmatprep.subr.bf16.mxu0 %v3233
  %3361 = vmatpush1.bf16.msra.mxu0 %v3232
  %3362 = vmatprep.subr.bf16.mxu0 %v3235
  %3363 = vmatpush1.bf16.msra.mxu0 %v3234
  %3364 = vmatprep.subr.bf16.mxu0 %v3237
  %3365 = vmatpush1.bf16.msra.mxu0 %v3236
  %3366 = vmatprep.subr.bf16.mxu0 %v3239
  %3367 = vmatpush1.bf16.msra.mxu0 %v3238
  %3368 = vmatprep.subr.bf16.mxu0 %v3241
  %3369 = vmatpush1.bf16.msra.mxu0 %v3240
  %3370 = vmatprep.subr.bf16.mxu0 %v3243
  %3371 = vmatpush1.bf16.msra.mxu0 %v3242
  %3372 = vmatprep.subr.bf16.mxu0 %v3245
  %3373 = vmatpush1.bf16.msra.mxu0 %v3244
  %3374 = vmatprep.mubr.bf16.mxu0 %v2943
  %3375 = vmatmul.mubr.bf16.gmra.mrb[0].mxu0 %v2942
  %v3376 = vpop.f32.mrb[0].mxu0
  %v3377 = vadd.f32 %v3015, %v3376
  %v3378 = vpop.f32.mrb[0].mxu0
  %v3379 = vadd.f32 %v3019, %v3378
  %v3380 = vpop.f32.mrb[0].mxu0
  %v3381 = vpop.f32.mrb[0].mxu0
  %3382 = vdwg.mxu0
  %3383 = vmatprep.subr.bf16.mxu0 %v3247
  %3384 = vmatpush1.bf16.msra.mxu0 %v3246
  %3385 = vmatprep.subr.bf16.mxu0 %v3249
  %3386 = vmatpush1.bf16.msra.mxu0 %v3248
  %3387 = vmatprep.subr.bf16.mxu0 %v3251
  %3388 = vmatpush1.bf16.msra.mxu0 %v3250
  %3389 = vmatprep.subr.bf16.mxu0 %v3253
  %3390 = vmatpush1.bf16.msra.mxu0 %v3252
  %3391 = vmatprep.subr.bf16.mxu0 %v3255
  %3392 = vmatpush1.bf16.msra.mxu0 %v3254
  %3393 = vmatprep.subr.bf16.mxu0 %v3257
  %3394 = vmatpush1.bf16.msra.mxu0 %v3256
  %3395 = vmatprep.subr.bf16.mxu0 %v3259
  %3396 = vmatpush1.bf16.msra.mxu0 %v3258
  %3397 = vmatprep.subr.bf16.mxu0 %v3261
  %3398 = vmatpush1.bf16.msra.mxu0 %v3260
  %3399 = vmatprep.subr.bf16.mxu0 %v3263
  %3400 = vmatpush1.bf16.msra.mxu0 %v3262
  %3401 = vmatprep.subr.bf16.mxu0 %v3265
  %3402 = vmatpush1.bf16.msra.mxu0 %v3264
  %3403 = vmatprep.subr.bf16.mxu0 %v3267
  %3404 = vmatpush1.bf16.msra.mxu0 %v3266
  %3405 = vmatprep.subr.bf16.mxu0 %v3269
  %3406 = vmatpush1.bf16.msra.mxu0 %v3268
  %3407 = vmatprep.subr.bf16.mxu0 %v3271
  %3408 = vmatpush1.bf16.msra.mxu0 %v3270
  %3409 = vmatprep.subr.bf16.mxu0 %v3273
  %3410 = vmatpush1.bf16.msra.mxu0 %v3272
  %3411 = vmatprep.subr.bf16.mxu0 %v3275
  %3412 = vmatpush1.bf16.msra.mxu0 %v3274
  %3413 = vmatprep.subr.bf16.mxu0 %v3277
  %3414 = vmatpush1.bf16.msra.mxu0 %v3276
  %3415 = vmatprep.mubr.bf16.mxu0 %v2945
  %3416 = vmatmul.mubr.bf16.gmra.mrb[0].mxu0 %v2944
  %v3417 = vpop.f32.mrb[0].mxu0
  %v3418 = vadd.f32 %v3377, %v3417
  %v3419 = vpop.f32.mrb[0].mxu0
  %v3420 = vadd.f32 %v3379, %v3419
  %v3421 = vpop.f32.mrb[0].mxu0
  %v3422 = vpop.f32.mrb[0].mxu0
  %3423 = vdwg.mxu0
  %vm3424 = vcmp.gt.f32.partialorder %v3418, 0.0
  %vm3425 = vcmp.gt.f32.partialorder %v3420, 0.0
  %v3426 = vmul.f32 %v3418, 0.1
  %v3427 = vmul.f32 %v3420, 0.1
  %v3428 = vsel %vm3424, %v3418, %v3426
  %v3429 = vsel %vm3425, %v3420, %v3427
  %v3430 = vld [vmem:[%s7] sm:$0x3]
  %v3432 = vlaneseq
  %v3433 = vshrl.u32 %v3432, 7
  %v3434 = vsub.s32 0, %v3433
  %v3435 = vrot.slane %v3430, %v3434
  %v3436 = vlaneseq
  %v3437 = vshrl.u32 %v3436, 7
  %v3438 = vsub.s32 1, %v3437
  %v3439 = vrot.slane %v3430, %v3438
  %v3442 = vmul.f32 %v3428, %v3435
  %v3443 = vmul.f32 %v3429, %v3439
  %v3444 = vadd.f32 %v3442, %v3443
  %3445 = vadd.xlane.f32.xlu0 %v3444
  %v3446 = vpop.xlane.xlu0 %3445
  %v3447 = vld [vmem:[#allocation2] sm:$0x1]
  %v3449 = vlaneseq
  %v3450 = vshrl.u32 %v3449, 7
  %v3451 = vsub.s32 0, %v3450
  %v3452 = vrot.slane %v3447, %v3451
  %v3454 = vadd.f32 %v3446, %v3452
  %v3455 = vsub.f32 0.0, %v3454
  %v3456 = vmul.f32 %v3455, 1.442695
  %v3457 = vpow.pop %v3456
  %v3458 = vadd.f32 %v3457, 1.0
  %v3459 = vrcp.pop %v3458
  %vm3460 = vcmask 7168
  %3461 = vst.msk [vmem:[%s9] sm:$0xff] %vm3460, %v3459
  // Predicated region
  $region38: #{discriminator_mlp_forward.1} parent=0 // pred_check
    _
  $region39: #{discriminator_mlp_forward.1} parent=0 // pred_check_branch
    %3463 = sbr.rel (0) target = $region41
  $region40: #{discriminator_mlp_forward.1} parent=0 // pred_region
    _
  $region41: #{discriminator_mlp_forward.1} parent=0 // pred_fallthru
    _
  // Predicated region
  $region42: #{discriminator_mlp_forward.1} parent=0 // pred_check
    _
  $region43: #{discriminator_mlp_forward.1} parent=0 // pred_check_branch
    %3465 = sbr.rel (0) target = $region45
  $region44: #{discriminator_mlp_forward.1} parent=0 // pred_region
    _
  $region45: #{discriminator_mlp_forward.1} parent=0 // pred_fallthru
    _

</llo_original>
